<compile_context>
chip_gen: v6e
topology: v6e:2x2x1
jax: 0.10.0
libtpu: 0.0.40
codegen_flags: <defaults>
</compile_context>

<pallas_src>
import functools

import jax
import jax.numpy as jnp
from jax import lax
from jax.experimental import pallas as pl
from jax.experimental.pallas import tpu as pltpu


def _vmem_capacity_bytes():
    """Physical VMEM per core; falls back to the conservative (v7x) value."""
    try:
        return int(pltpu.get_tpu_info().vmem_capacity_bytes)
    except Exception:  # best-effort query; 64 MiB is safe on every generation
        return 64 * 1024 * 1024


def _pick_q_tile(t, max_tq):
    """Largest multiple-of-8 tile <= max_tq that divides T (or T itself)."""
    if t <= max_tq:
        return t
    if t % 8 == 0:
        start = max_tq - (max_tq % 8)
        for cand in range(start, 7, -8):
            if t % cand == 0:
                return cand
    # TODO(synk): T with no multiple-of-8 divisor <= max_tq falls back to a single
    # big tile; a cdiv grid with a masked tail would bound VMEM for such shapes.
    return t


def _attention_kernel(*refs, num_heads, head_dim, tq, embed_dim, mask_mode,
                      output_attentions, project_in_kernel, compute_dtype):
    refs = list(refs)
    if project_in_kernel:
        hidden_ref = refs.pop(0)
        objq_ref = refs.pop(0)
    else:
        qk_in_ref = refs.pop(0)
        v_in_ref = refs.pop(0)
    mask_ref = refs.pop(0) if mask_mode != "none" else None
    if project_in_kernel:
        wqk_ref = refs.pop(0)
        bqk_ref = refs.pop(0)
        wv_ref = refs.pop(0)
        bv_ref = refs.pop(0)
    wo_ref = refs.pop(0)
    bo_ref = refs.pop(0)
    out_ref = refs.pop(0)
    attn_ref = refs.pop(0) if output_attentions else None
    if project_in_kernel:
        qk_scr = refs.pop(0)
        v_scr = refs.pop(0)
    ctx_scr = refs.pop(0)
    assert not refs

    qi = pl.program_id(1)

    if project_in_kernel:
        # Q/K/V projections computed once per batch row (first q-tile), cached in
        # VMEM scratch and reused by all q-tiles of that row. Q and K are fused
        # into one [T, E] x [E, 2E] matmul; the softmax scaling is already folded
        # into the Q weights/bias on the host.
        @pl.when(qi == 0)
        def _project():
            h = hidden_ref[...]                                    # [T, E]
            hq = (h + objq_ref[...]).astype(compute_dtype)
            qk = (jnp.dot(hq, wqk_ref[...],
                          preferred_element_type=jnp.float32) + bqk_ref[...])
            qk_scr[...] = qk.astype(qk_scr.dtype)                  # [T, 2E]
            v = (jnp.dot(h.astype(compute_dtype), wv_ref[...],
                         preferred_element_type=jnp.float32) + bv_ref[...])
            v_scr[...] = v.astype(v_scr.dtype)                     # [T, E]

        qk_src, v_src = qk_scr, v_scr
    else:
        qk_src, v_src = qk_in_ref, v_in_ref

    mask = mask_ref[...] if mask_ref is not None else None   # [tq,T] or [1,T]

    q_start = pl.multiple_of(qi * tq, 8)

    for hd in range(num_heads):
        lo = hd * head_dim
        hi = lo + head_dim

        # Only the Q half of the fused Q|K buffer is touched for the query tile.
        q_h = qk_src[pl.ds(q_start, tq), lo:hi]                    # [tq, Dh]
        k_h = qk_src[:, embed_dim + lo:embed_dim + hi]             # [T, Dh]
        v_h = v_src[:, lo:hi]                                      # [T, Dh]

        # scores = q_h @ k_h^T (contract head dim of both; no transpose copy)
        s = lax.dot_general(q_h, k_h, (((1,), (1,)), ((), ())),
                            preferred_element_type=jnp.float32)    # [tq, T]
        if mask is not None:
            s = s + mask

        # fp32 max-subtracted softmax; reciprocal runs on the EUP slot.
        s_max = jnp.max(s, axis=-1, keepdims=True)
        e = jnp.exp(s - s_max)
        denom = jnp.sum(e, axis=-1, keepdims=True)
        p = e * pl.reciprocal(denom, approx=True)                  # [tq, T]

        if attn_ref is not None:
            attn_ref[hd] = p.astype(attn_ref.dtype)

        # TODO(synk): dropout is identity here (p=0.0 / eval mode), so it is omitted.
        o_h = jnp.dot(p.astype(compute_dtype), v_h,
                      preferred_element_type=jnp.float32)          # [tq, Dh]

        # Per-head context goes into a lane slice of the [tq, E] context scratch;
        # a single K=E output-projection matmul follows (full MXU depth, no
        # per-head fp32 accumulator living across the unrolled loop).
        ctx_scr[:, lo:hi] = o_h.astype(ctx_scr.dtype)

    out = (jnp.dot(ctx_scr[...], wo_ref[...],
                   preferred_element_type=jnp.float32) + bo_ref[...])
    out_ref[...] = out.astype(out_ref.dtype)


def table_transformer_attention(hidden_states, object_queries, attention_mask,
                                params, *, num_heads,
                                output_attentions=False,
                                compute_dtype=jnp.bfloat16,
                                attn_weights_dtype=jnp.bfloat16,
                                max_q_tile=None,
                                project_in_kernel=None,
                                vmem_limit_bytes=None):
    """Pallas-backed TableTransformerAttention forward (self-attention path).

    hidden_states:   [B, T, E]
    object_queries:  [B, T, E]   (position embeddings added to the Q/K input)
    attention_mask:  additive mask [B,1,T,T], key-only [B,1,1,T], or None
    params: dict with 'wq','bq','wk','bk','wv','bv','wo','bo'
            (weights pre-transposed to [E_in, E_out], biases [1, E_out])
    Returns (attn_output [B, T, E], attn_weights [B, H, T, T] or None).
    """
    B, T, E = hidden_states.shape
    head_dim = E // num_heads
    scaling = head_dim ** -0.5

    # ---- Generation-aware VMEM budget / tiling (v5e,v6e: 128 MiB, v7x: 64 MiB).
    vmem_cap = _vmem_capacity_bytes()
    if vmem_limit_bytes is None:
        vmem_limit_bytes = (vmem_cap * 3) // 4            # 96 MiB / 48 MiB
    small_vmem = vmem_cap <= 64 * 1024 * 1024
    if max_q_tile is None:
        if output_attentions:
            max_q_tile = 128 if small_vmem else 256
        else:
            max_q_tile = 256 if small_vmem else 512
    tq = _pick_q_tile(T, max_q_tile)
    n_q = T // tq

    itemsize = jnp.dtype(compute_dtype).itemsize
    if project_in_kernel is None:
        # Hoist the Q/K/V projections to XLA when the in-kernel cache would eat
        # too much of the per-core VMEM budget (v7x, large T*E).
        project_in_kernel = 3 * T * E * itemsize <= vmem_cap // 4

    # ---- Weight prep: fold the softmax scaling into the Q projection, fuse Q
    # and K into one [E, 2E] weight, cast MXU inputs to compute_dtype once here.
    wq = params["wq"].astype(jnp.float32) * scaling
    bq = params["bq"].astype(jnp.float32) * scaling
    wqk = jnp.concatenate([wq, params["wk"].astype(jnp.float32)], axis=1)
    bqk = jnp.concatenate([bq, params["bk"].astype(jnp.float32)], axis=1)
    wqk = wqk.astype(compute_dtype)
    wv = params["wv"].astype(compute_dtype)
    bv = params["bv"].astype(jnp.float32)
    wo = params["wo"].astype(compute_dtype)
    bo = params["bo"].astype(jnp.float32)

    # ---- Mask handling: prefer the key-only [B,1,1,T] stream (T/tq x less HBM
    # traffic than tiling a full [B,1,T,T] mask per q-tile).
    if attention_mask is None:
        mask_mode = "none"
        mask_operands = ()
        mask_specs = []
    else:
        attention_mask = attention_mask.astype(jnp.float32)
        if attention_mask.shape[2] == 1:
            mask_mode = "key"
        else:
            mask_mode = "full"
            try:  # demote a query-broadcast mask to the key-only path
                if bool((attention_mask == attention_mask[:, :, :1, :]).all()):
                    attention_mask = attention_mask[:, :, :1, :]
                    mask_mode = "key"
            except Exception:  # traced mask: keep the full (tiled) path
                pass
        mask_operands = (attention_mask,)
        if mask_mode == "key":
            mask_specs = [pl.BlockSpec((None, None, 1, T),
                                       lambda b, qi: (b, 0, 0, 0))]
        else:
            mask_specs = [pl.BlockSpec((None, None, tq, T),
                                       lambda b, qi: (b, 0, qi, 0))]

    # TODO(synk): the constant weight operands are still double-buffered by the
    # pipeline; pl.Buffered(1) on their BlockSpecs would reclaim ~4*E^2*itemsize
    # of VMEM per extra buffer if single-buffering is verified on this JAX build.
    if project_in_kernel:
        data_operands = (hidden_states, object_queries)
        data_specs = [
            pl.BlockSpec((None, T, E), lambda b, qi: (b, 0, 0)),   # hidden (row)
            pl.BlockSpec((None, T, E), lambda b, qi: (b, 0, 0)),   # object_queries
        ]
        weight_operands = (wqk, bqk, wv, bv, wo, bo)
        weight_specs = [
            pl.BlockSpec((E, 2 * E), lambda b, qi: (0, 0)),        # fused W_qk
            pl.BlockSpec((1, 2 * E), lambda b, qi: (0, 0)),        # fused b_qk
            pl.BlockSpec((E, E), lambda b, qi: (0, 0)),            # W_v
            pl.BlockSpec((1, E), lambda b, qi: (0, 0)),            # b_v
            pl.BlockSpec((E, E), lambda b, qi: (0, 0)),            # W_o
            pl.BlockSpec((1, E), lambda b, qi: (0, 0)),            # b_o
        ]
        scratch_shapes = [
            pltpu.VMEM((T, 2 * E), compute_dtype),   # cached Q|K projections
            pltpu.VMEM((T, E), compute_dtype),       # cached V projection
            pltpu.VMEM((tq, E), compute_dtype),      # per-tile head contexts
        ]
        # q-tile axis reuses the qi==0 scratch -> must stay sequential.
        dims = ("parallel", "arbitrary")
    else:
        # Hoisted path: projections as plain XLA GEMMs; kernel consumes Q|K, V.
        hq = (hidden_states + object_queries).astype(compute_dtype)
        qk = jnp.einsum("bte,ef->btf", hq, wqk,
                        preferred_element_type=jnp.float32) + bqk
        v = jnp.einsum("bte,ef->btf", hidden_states.astype(compute_dtype), wv,
                       preferred_element_type=jnp.float32) + bv
        data_operands = (qk.astype(compute_dtype), v.astype(compute_dtype))
        data_specs = [
            pl.BlockSpec((None, T, 2 * E), lambda b, qi: (b, 0, 0)),
            pl.BlockSpec((None, T, E), lambda b, qi: (b, 0, 0)),
        ]
        weight_operands = (wo, bo)
        weight_specs = [
            pl.BlockSpec((E, E), lambda b, qi: (0, 0)),            # W_o
            pl.BlockSpec((1, E), lambda b, qi: (0, 0)),            # b_o
        ]
        scratch_shapes = [pltpu.VMEM((tq, E), compute_dtype)]
        dims = ("parallel", "parallel")

    out_shapes = [jax.ShapeDtypeStruct((B, T, E), hidden_states.dtype)]
    out_specs = [pl.BlockSpec((None, tq, E), lambda b, qi: (b, qi, 0))]
    if output_attentions:
        out_shapes.append(
            jax.ShapeDtypeStruct((B, num_heads, T, T), attn_weights_dtype))
        out_specs.append(
            pl.BlockSpec((None, num_heads, tq, T), lambda b, qi: (b, 0, qi, 0)))

    kernel = functools.partial(
        _attention_kernel,
        num_heads=num_heads, head_dim=head_dim, tq=tq, embed_dim=E,
        mask_mode=mask_mode, output_attentions=output_attentions,
        project_in_kernel=project_in_kernel, compute_dtype=compute_dtype)

    results = pl.pallas_call(
        kernel,
        out_shape=tuple(out_shapes),
        grid_spec=pltpu.PrefetchScalarGridSpec(
            num_scalar_prefetch=0,
            grid=(B, n_q),
            in_specs=data_specs + mask_specs + weight_specs,
            out_specs=out_specs,
            scratch_shapes=scratch_shapes),
        compiler_params=pltpu.CompilerParams(
            dimension_semantics=dims,
            vmem_limit_bytes=int(vmem_limit_bytes)),
    )(*data_operands, *mask_operands, *weight_operands)

    out = results[0]
    attn = results[1] if output_attentions else None
    return out, attn


def _reference(hidden_states, object_queries, attention_mask, params, *, num_heads):
    """Pure-JAX reference mirroring the PyTorch forward (self-attention path)."""
    B, T, E = hidden_states.shape
    Dh = E // num_heads
    scaling = Dh ** -0.5
    hq = hidden_states + object_queries
    q = (hq @ params["wq"] + params["bq"]) * scaling
    k = hq @ params["wk"] + params["bk"]
    v = hidden_states @ params["wv"] + params["bv"]

    def shape(x):
        return x.reshape(B, T, num_heads, Dh).transpose(0, 2, 1, 3)

    qh, kh, vh = shape(q), shape(k), shape(v)
    s = jnp.einsum("bhtd,bhsd->bhts", qh, kh)
    if attention_mask is not None:
        s = s + attention_mask
    p = jax.nn.softmax(s, axis=-1)
    o = jnp.einsum("bhts,bhsd->bhtd", p, vh)
    o = o.transpose(0, 2, 1, 3).reshape(B, T, E)
    return o @ params["wo"] + params["bo"], p


if __name__ == "__main__":
    B, T, E, H = 2, 8, 32, 4

    key = jax.random.PRNGKey(0)
    keys = jax.random.split(key, 10)

    hidden_states = jax.random.normal(keys[0], (B, T, E), dtype=jnp.float32)
    object_queries = jax.random.normal(keys[1], (B, T, E), dtype=jnp.float32)

    # Full additive mask [B,1,T,T] that genuinely varies with the query row
    # (so it exercises the tiled full-mask path rather than being demoted).
    full_mask = jnp.zeros((B, 1, T, T), dtype=jnp.float32)
    full_mask = full_mask.at[1, 0, :, -1].set(-1e9)
    full_mask = full_mask.at[0, 0, 0:2, 3].set(-1e9)

    # Key-only additive mask [B,1,1,T] (cheap broadcast path).
    key_mask = jnp.zeros((B, 1, 1, T), dtype=jnp.float32)
    key_mask = key_mask.at[1, 0, 0, -1].set(-1e9)

    def init_linear(kw, kb, fan_in, fan_out):
        # deterministic synthetic init (weights stored as [in, out], pre-transposed)
        w = jax.random.normal(kw, (fan_in, fan_out), dtype=jnp.float32) * 0.05
        b = jax.random.normal(kb, (1, fan_out), dtype=jnp.float32) * 0.05
        return w, b

    wq, bq = init_linear(keys[2], keys[3], E, E)
    wk, bk = init_linear(keys[4], keys[5], E, E)
    wv, bv = init_linear(keys[6], keys[7], E, E)
    wo, bo = init_linear(keys[8], keys[9], E, E)
    params = dict(wq=wq, bq=bq, wk=wk, bk=bk, wv=wv, bv=bv, wo=wo, bo=bo)

    ref_out_full, ref_attn_full = _reference(hidden_states, object_queries,
                                             full_mask, params, num_heads=H)
    ref_out_key, _ = _reference(hidden_states, object_queries,
                                key_mask, params, num_heads=H)

    # --- Run 1: fp32 compute + fp32 attn weights (tight check, in-kernel
    #            projection path, tiled full-mask path).
    out, attn = table_transformer_attention(
        hidden_states, object_queries, full_mask, params, num_heads=H,
        output_attentions=True, compute_dtype=jnp.float32,
        attn_weights_dtype=jnp.float32)
    jax.block_until_ready(out)
    jax.block_until_ready(attn)
    assert out.shape == (B, T, E) and attn.shape == (B, H, T, T)
    # Tolerance accounts for the EUP approximate reciprocal in the softmax.
    assert jnp.allclose(out, ref_out_full, atol=2e-3, rtol=2e-3)
    assert jnp.allclose(attn, ref_attn_full, atol=2e-3, rtol=2e-3)

    # --- Run 2: performance defaults (bf16 MXU inputs, bf16 attention weights).
    out_bf, attn_bf = table_transformer_attention(
        hidden_states, object_queries, full_mask, params, num_heads=H,
        output_attentions=True)
    jax.block_until_ready(out_bf)
    jax.block_until_ready(attn_bf)
    assert attn_bf.dtype == jnp.bfloat16
    assert jnp.allclose(out_bf, ref_out_full, atol=3e-2, rtol=3e-2)
    assert jnp.allclose(attn_bf.astype(jnp.float32), ref_attn_full,
                        atol=2e-2, rtol=2e-2)

    # --- Run 3: key-only mask, no attention-weights output (lowest HBM traffic).
    out_k, attn_none = table_transformer_attention(
        hidden_states, object_queries, key_mask, params, num_heads=H,
        output_attentions=False)
    jax.block_until_ready(out_k)
    assert attn_none is None
    assert out_k.shape == (B, T, E)
    assert jnp.allclose(out_k, ref_out_key, atol=3e-2, rtol=3e-2)

    # --- Run 4: hoisted-projection fallback path (v7x / large T*E), fp32, tight.
    out_h, attn_h = table_transformer_attention(
        hidden_states, object_queries, full_mask, params, num_heads=H,
        output_attentions=True, compute_dtype=jnp.float32,
        attn_weights_dtype=jnp.float32, project_in_kernel=False)
    jax.block_until_ready(out_h)
    jax.block_until_ready(attn_h)
    assert jnp.allclose(out_h, ref_out_full, atol=2e-3, rtol=2e-3)
    assert jnp.allclose(attn_h, ref_attn_full, atol=2e-3, rtol=2e-3)

    print("KERNEL_OK")
</pallas_src>

<mosaic_0001>
module attributes {stable_mosaic.version = 11 : i64} {
  func.func @_attention_kernel(%arg0: i32, %arg1: i32, %arg2: memref<1x8x32xf32, #tpu.memory_space<vmem>>, %arg3: memref<1x8x32xf32, #tpu.memory_space<vmem>>, %arg4: memref<1x1x8x8xf32, #tpu.memory_space<vmem>>, %arg5: memref<32x64xf32, #tpu.memory_space<vmem>>, %arg6: memref<1x64xf32, #tpu.memory_space<vmem>>, %arg7: memref<32x32xf32, #tpu.memory_space<vmem>>, %arg8: memref<1x32xf32, #tpu.memory_space<vmem>>, %arg9: memref<32x32xf32, #tpu.memory_space<vmem>>, %arg10: memref<1x32xf32, #tpu.memory_space<vmem>>, %arg11: memref<1x8x32xf32, #tpu.memory_space<vmem>>, %arg12: memref<1x4x8x8xf32, #tpu.memory_space<vmem>>, %arg13: memref<8x64xf32, #tpu.memory_space<vmem>>, %arg14: memref<8x32xf32, #tpu.memory_space<vmem>>, %arg15: memref<8x32xf32, #tpu.memory_space<vmem>>) attributes {dimension_semantics = [#tpu.dimension_semantics<parallel>, #tpu.dimension_semantics<arbitrary>], iteration_bounds = array<i64: 2, 1>, scalar_prefetch = 0 : i64, scratch_operands = 3 : i64, tpu.core_type = #tpu.core_type<tc>, window_params = [{transform_indices = @transform_0, window_bounds = array<i64: 1, 8, 32>}, {transform_indices = @transform_1, window_bounds = array<i64: 1, 8, 32>}, {transform_indices = @transform_2, window_bounds = array<i64: 1, 1, 8, 8>}, {pipeline_mode = #tpu.pipeline_mode<synchronous>, transform_indices = @transform_3, window_bounds = array<i64: 32, 64>}, {pipeline_mode = #tpu.pipeline_mode<synchronous>, transform_indices = @transform_4, window_bounds = array<i64: 1, 64>}, {pipeline_mode = #tpu.pipeline_mode<synchronous>, transform_indices = @transform_5, window_bounds = array<i64: 32, 32>}, {pipeline_mode = #tpu.pipeline_mode<synchronous>, transform_indices = @transform_6, window_bounds = array<i64: 1, 32>}, {pipeline_mode = #tpu.pipeline_mode<synchronous>, transform_indices = @transform_7, window_bounds = array<i64: 32, 32>}, {pipeline_mode = #tpu.pipeline_mode<synchronous>, transform_indices = @transform_8, window_bounds = array<i64: 1, 32>}, {transform_indices = @transform_9, window_bounds = array<i64: 1, 8, 32>}, {transform_indices = @transform_10, window_bounds = array<i64: 1, 4, 8, 8>}]} {
    %c0_i32 = arith.constant 0 : i32
    %0 = arith.cmpi eq, %arg1, %c0_i32 : i32
    %1 = arith.extui %0 : i1 to i32
    %c0_i32_0 = arith.constant 0 : i32
    %2 = arith.cmpi ne, %1, %c0_i32_0 : i32
    scf.if %2 {
      %c0_63 = arith.constant 0 : index
      %c0_64 = arith.constant 0 : index
      %c0_65 = arith.constant 0 : index
      %100 = vector.load %arg2[%c0_63, %c0_64, %c0_65] : memref<1x8x32xf32, #tpu.memory_space<vmem>>, vector<1x8x32xf32>
      %101 = vector.shape_cast %100 : vector<1x8x32xf32> to vector<8x32xf32>
      %c0_66 = arith.constant 0 : index
      %c0_67 = arith.constant 0 : index
      %c0_68 = arith.constant 0 : index
      %102 = vector.load %arg3[%c0_66, %c0_67, %c0_68] : memref<1x8x32xf32, #tpu.memory_space<vmem>>, vector<1x8x32xf32>
      %103 = vector.shape_cast %102 : vector<1x8x32xf32> to vector<8x32xf32>
      %104 = arith.addf %101, %103 : vector<8x32xf32>
      %c0_69 = arith.constant 0 : index
      %c0_70 = arith.constant 0 : index
      %105 = vector.load %arg5[%c0_69, %c0_70] : memref<32x64xf32, #tpu.memory_space<vmem>>, vector<32x64xf32>
      %cst_71 = arith.constant dense<0.000000e+00> : vector<8x64xf32>
      %106 = tpu.matmul %104, %105, %cst_71 {dimension_numbers = #tpu.dot_dimension_numbers<[1], [0], [0], [1], [0, 0, 1, 1], [], []>} : vector<8x32xf32>, vector<32x64xf32>, vector<8x64xf32> -> vector<8x64xf32>
      %c0_72 = arith.constant 0 : index
      %c0_73 = arith.constant 0 : index
      %107 = vector.load %arg6[%c0_72, %c0_73] : memref<1x64xf32, #tpu.memory_space<vmem>>, vector<1x64xf32>
      %108 = vector.broadcast %107 : vector<1x64xf32> to vector<8x64xf32>
      %109 = arith.addf %106, %108 : vector<8x64xf32>
      %c0_74 = arith.constant 0 : index
      %c0_75 = arith.constant 0 : index
      %110 = vector.load %arg13[%c0_74, %c0_75] : memref<8x64xf32, #tpu.memory_space<vmem>>, vector<8x64xf32>
      tpu.vector_store %arg13[%c0_74, %c0_75], %109 {strides = array<i32>} : memref<8x64xf32, #tpu.memory_space<vmem>>, vector<8x64xf32>,
      %c0_76 = arith.constant 0 : index
      %c0_77 = arith.constant 0 : index
      %111 = vector.load %arg7[%c0_76, %c0_77] : memref<32x32xf32, #tpu.memory_space<vmem>>, vector<32x32xf32>
      %cst_78 = arith.constant dense<0.000000e+00> : vector<8x32xf32>
      %112 = tpu.matmul %101, %111, %cst_78 {dimension_numbers = #tpu.dot_dimension_numbers<[1], [0], [0], [1], [0, 0, 1, 1], [], []>} : vector<8x32xf32>, vector<32x32xf32>, vector<8x32xf32> -> vector<8x32xf32>
      %c0_79 = arith.constant 0 : index
      %c0_80 = arith.constant 0 : index
      %113 = vector.load %arg8[%c0_79, %c0_80] : memref<1x32xf32, #tpu.memory_space<vmem>>, vector<1x32xf32>
      %114 = vector.broadcast %113 : vector<1x32xf32> to vector<8x32xf32>
      %115 = arith.addf %112, %114 : vector<8x32xf32>
      %c0_81 = arith.constant 0 : index
      %c0_82 = arith.constant 0 : index
      %116 = vector.load %arg14[%c0_81, %c0_82] : memref<8x32xf32, #tpu.memory_space<vmem>>, vector<8x32xf32>
      tpu.vector_store %arg14[%c0_81, %c0_82], %115 {strides = array<i32>} : memref<8x32xf32, #tpu.memory_space<vmem>>, vector<8x32xf32>,
    } else {
    }
    %c0 = arith.constant 0 : index
    %c0_1 = arith.constant 0 : index
    %c0_2 = arith.constant 0 : index
    %c0_3 = arith.constant 0 : index
    %3 = vector.load %arg4[%c0, %c0_1, %c0_2, %c0_3] : memref<1x1x8x8xf32, #tpu.memory_space<vmem>>, vector<1x1x8x8xf32>
    %4 = vector.shape_cast %3 : vector<1x1x8x8xf32> to vector<8x8xf32>
    %c8_i32 = arith.constant 8 : i32
    %5 = arith.muli %arg1, %c8_i32 : i32
    %6 = tpu.assume_multiple %5, 8 : i32
    %7 = arith.index_cast %6 : i32 to index
    %c0_4 = arith.constant 0 : index
    %8 = vector.load %arg13[%7, %c0_4] : memref<8x64xf32, #tpu.memory_space<vmem>>, vector<8x8xf32>
    %c0_5 = arith.constant 0 : index
    %c32 = arith.constant 32 : index
    %9 = vector.load %arg13[%c0_5, %c32] : memref<8x64xf32, #tpu.memory_space<vmem>>, vector<8x8xf32>
    %c0_6 = arith.constant 0 : index
    %c0_7 = arith.constant 0 : index
    %10 = vector.load %arg14[%c0_6, %c0_7] : memref<8x32xf32, #tpu.memory_space<vmem>>, vector<8x8xf32>
    %cst = arith.constant dense<0.000000e+00> : vector<8x8xf32>
    %11 = tpu.matmul %8, %9, %cst {dimension_numbers = #tpu.dot_dimension_numbers<[1], [1], [0], [0], [0, 0, 1, 0], [], []>} : vector<8x8xf32>, vector<8x8xf32>, vector<8x8xf32> -> vector<8x8xf32>
    %12 = arith.addf %11, %4 : vector<8x8xf32>
    %cst_8 = arith.constant dense<0xFF800000> : vector<8xf32>
    %13 = vector.multi_reduction <maximumf>, %12, %cst_8 [1] : vector<8x8xf32> to vector<8xf32>
    %14 = vector.shape_cast %13 : vector<8xf32> to vector<8x1xf32>
    %15 = vector.broadcast %14 : vector<8x1xf32> to vector<8x8xf32>
    %16 = arith.subf %12, %15 : vector<8x8xf32>
    %17 = math.exp %16 : vector<8x8xf32>
    %cst_9 = arith.constant dense<0.000000e+00> : vector<8xf32>
    %18 = vector.multi_reduction <add>, %17, %cst_9 [1] : vector<8x8xf32> to vector<8xf32>
    %19 = vector.shape_cast %18 : vector<8xf32> to vector<8x1xf32>
    %20 = tpu.reciprocal %19 {approx = true} : vector<8x1xf32> -> vector<8x1xf32>
    %21 = vector.broadcast %20 : vector<8x1xf32> to vector<8x8xf32>
    %22 = arith.mulf %17, %21 : vector<8x8xf32>
    %c0_10 = arith.constant 0 : index
    %c0_11 = arith.constant 0 : index
    %c0_12 = arith.constant 0 : index
    %c0_13 = arith.constant 0 : index
    %23 = vector.load %arg12[%c0_10, %c0_11, %c0_12, %c0_13] : memref<1x4x8x8xf32, #tpu.memory_space<vmem>>, vector<1x1x8x8xf32>
    %24 = vector.shape_cast %23 : vector<1x1x8x8xf32> to vector<8x8xf32>
    %25 = vector.shape_cast %22 : vector<8x8xf32> to vector<1x1x8x8xf32>
    tpu.vector_store %arg12[%c0_10, %c0_11, %c0_12, %c0_13], %25 {strides = array<i32>} : memref<1x4x8x8xf32, #tpu.memory_space<vmem>>, vector<1x1x8x8xf32>,
    %cst_14 = arith.constant dense<0.000000e+00> : vector<8x8xf32>
    %26 = tpu.matmul %22, %10, %cst_14 {dimension_numbers = #tpu.dot_dimension_numbers<[1], [0], [0], [1], [0, 0, 1, 1], [], []>} : vector<8x8xf32>, vector<8x8xf32>, vector<8x8xf32> -> vector<8x8xf32>
    %c0_15 = arith.constant 0 : index
    %c0_16 = arith.constant 0 : index
    %27 = vector.load %arg15[%c0_15, %c0_16] : memref<8x32xf32, #tpu.memory_space<vmem>>, vector<8x8xf32>
    tpu.vector_store %arg15[%c0_15, %c0_16], %26 {strides = array<i32>} : memref<8x32xf32, #tpu.memory_space<vmem>>, vector<8x8xf32>,
    %28 = arith.index_cast %6 : i32 to index
    %c8 = arith.constant 8 : index
    %29 = vector.load %arg13[%28, %c8] : memref<8x64xf32, #tpu.memory_space<vmem>>, vector<8x8xf32>
    %c0_17 = arith.constant 0 : index
    %c40 = arith.constant 40 : index
    %30 = vector.load %arg13[%c0_17, %c40] : memref<8x64xf32, #tpu.memory_space<vmem>>, vector<8x8xf32>
    %c0_18 = arith.constant 0 : index
    %c8_19 = arith.constant 8 : index
    %31 = vector.load %arg14[%c0_18, %c8_19] : memref<8x32xf32, #tpu.memory_space<vmem>>, vector<8x8xf32>
    %cst_20 = arith.constant dense<0.000000e+00> : vector<8x8xf32>
    %32 = tpu.matmul %29, %30, %cst_20 {dimension_numbers = #tpu.dot_dimension_numbers<[1], [1], [0], [0], [0, 0, 1, 0], [], []>} : vector<8x8xf32>, vector<8x8xf32>, vector<8x8xf32> -> vector<8x8xf32>
    %33 = arith.addf %32, %4 : vector<8x8xf32>
    %cst_21 = arith.constant dense<0xFF800000> : vector<8xf32>
    %34 = vector.multi_reduction <maximumf>, %33, %cst_21 [1] : vector<8x8xf32> to vector<8xf32>
    %35 = vector.shape_cast %34 : vector<8xf32> to vector<8x1xf32>
    %36 = vector.broadcast %35 : vector<8x1xf32> to vector<8x8xf32>
    %37 = arith.subf %33, %36 : vector<8x8xf32>
    %38 = math.exp %37 : vector<8x8xf32>
    %cst_22 = arith.constant dense<0.000000e+00> : vector<8xf32>
    %39 = vector.multi_reduction <add>, %38, %cst_22 [1] : vector<8x8xf32> to vector<8xf32>
    %40 = vector.shape_cast %39 : vector<8xf32> to vector<8x1xf32>
    %41 = tpu.reciprocal %40 {approx = true} : vector<8x1xf32> -> vector<8x1xf32>
    %42 = vector.broadcast %41 : vector<8x1xf32> to vector<8x8xf32>
    %43 = arith.mulf %38, %42 : vector<8x8xf32>
    %c0_23 = arith.constant 0 : index
    %c1 = arith.constant 1 : index
    %c0_24 = arith.constant 0 : index
    %c0_25 = arith.constant 0 : index
    %44 = vector.load %arg12[%c0_23, %c1, %c0_24, %c0_25] : memref<1x4x8x8xf32, #tpu.memory_space<vmem>>, vector<1x1x8x8xf32>
    %45 = vector.shape_cast %44 : vector<1x1x8x8xf32> to vector<8x8xf32>
    %46 = vector.shape_cast %43 : vector<8x8xf32> to vector<1x1x8x8xf32>
    tpu.vector_store %arg12[%c0_23, %c1, %c0_24, %c0_25], %46 {strides = array<i32>} : memref<1x4x8x8xf32, #tpu.memory_space<vmem>>, vector<1x1x8x8xf32>,
    %cst_26 = arith.constant dense<0.000000e+00> : vector<8x8xf32>
    %47 = tpu.matmul %43, %31, %cst_26 {dimension_numbers = #tpu.dot_dimension_numbers<[1], [0], [0], [1], [0, 0, 1, 1], [], []>} : vector<8x8xf32>, vector<8x8xf32>, vector<8x8xf32> -> vector<8x8xf32>
    %c0_27 = arith.constant 0 : index
    %c8_28 = arith.constant 8 : index
    %48 = vector.load %arg15[%c0_27, %c8_28] : memref<8x32xf32, #tpu.memory_space<vmem>>, vector<8x8xf32>
    tpu.vector_store %arg15[%c0_27, %c8_28], %47 {strides = array<i32>} : memref<8x32xf32, #tpu.memory_space<vmem>>, vector<8x8xf32>,
    %49 = arith.index_cast %6 : i32 to index
    %c16 = arith.constant 16 : index
    %50 = vector.load %arg13[%49, %c16] : memref<8x64xf32, #tpu.memory_space<vmem>>, vector<8x8xf32>
    %c0_29 = arith.constant 0 : index
    %c48 = arith.constant 48 : index
    %51 = vector.load %arg13[%c0_29, %c48] : memref<8x64xf32, #tpu.memory_space<vmem>>, vector<8x8xf32>
    %c0_30 = arith.constant 0 : index
    %c16_31 = arith.constant 16 : index
    %52 = vector.load %arg14[%c0_30, %c16_31] : memref<8x32xf32, #tpu.memory_space<vmem>>, vector<8x8xf32>
    %cst_32 = arith.constant dense<0.000000e+00> : vector<8x8xf32>
    %53 = tpu.matmul %50, %51, %cst_32 {dimension_numbers = #tpu.dot_dimension_numbers<[1], [1], [0], [0], [0, 0, 1, 0], [], []>} : vector<8x8xf32>, vector<8x8xf32>, vector<8x8xf32> -> vector<8x8xf32>
    %54 = arith.addf %53, %4 : vector<8x8xf32>
    %cst_33 = arith.constant dense<0xFF800000> : vector<8xf32>
    %55 = vector.multi_reduction <maximumf>, %54, %cst_33 [1] : vector<8x8xf32> to vector<8xf32>
    %56 = vector.shape_cast %55 : vector<8xf32> to vector<8x1xf32>
    %57 = vector.broadcast %56 : vector<8x1xf32> to vector<8x8xf32>
    %58 = arith.subf %54, %57 : vector<8x8xf32>
    %59 = math.exp %58 : vector<8x8xf32>
    %cst_34 = arith.constant dense<0.000000e+00> : vector<8xf32>
    %60 = vector.multi_reduction <add>, %59, %cst_34 [1] : vector<8x8xf32> to vector<8xf32>
    %61 = vector.shape_cast %60 : vector<8xf32> to vector<8x1xf32>
    %62 = tpu.reciprocal %61 {approx = true} : vector<8x1xf32> -> vector<8x1xf32>
    %63 = vector.broadcast %62 : vector<8x1xf32> to vector<8x8xf32>
    %64 = arith.mulf %59, %63 : vector<8x8xf32>
    %c0_35 = arith.constant 0 : index
    %c2 = arith.constant 2 : index
    %c0_36 = arith.constant 0 : index
    %c0_37 = arith.constant 0 : index
    %65 = vector.load %arg12[%c0_35, %c2, %c0_36, %c0_37] : memref<1x4x8x8xf32, #tpu.memory_space<vmem>>, vector<1x1x8x8xf32>
    %66 = vector.shape_cast %65 : vector<1x1x8x8xf32> to vector<8x8xf32>
    %67 = vector.shape_cast %64 : vector<8x8xf32> to vector<1x1x8x8xf32>
    tpu.vector_store %arg12[%c0_35, %c2, %c0_36, %c0_37], %67 {strides = array<i32>} : memref<1x4x8x8xf32, #tpu.memory_space<vmem>>, vector<1x1x8x8xf32>,
    %cst_38 = arith.constant dense<0.000000e+00> : vector<8x8xf32>
    %68 = tpu.matmul %64, %52, %cst_38 {dimension_numbers = #tpu.dot_dimension_numbers<[1], [0], [0], [1], [0, 0, 1, 1], [], []>} : vector<8x8xf32>, vector<8x8xf32>, vector<8x8xf32> -> vector<8x8xf32>
    %c0_39 = arith.constant 0 : index
    %c16_40 = arith.constant 16 : index
    %69 = vector.load %arg15[%c0_39, %c16_40] : memref<8x32xf32, #tpu.memory_space<vmem>>, vector<8x8xf32>
    tpu.vector_store %arg15[%c0_39, %c16_40], %68 {strides = array<i32>} : memref<8x32xf32, #tpu.memory_space<vmem>>, vector<8x8xf32>,
    %70 = arith.index_cast %6 : i32 to index
    %c24 = arith.constant 24 : index
    %71 = vector.load %arg13[%70, %c24] : memref<8x64xf32, #tpu.memory_space<vmem>>, vector<8x8xf32>
    %c0_41 = arith.constant 0 : index
    %c56 = arith.constant 56 : index
    %72 = vector.load %arg13[%c0_41, %c56] : memref<8x64xf32, #tpu.memory_space<vmem>>, vector<8x8xf32>
    %c0_42 = arith.constant 0 : index
    %c24_43 = arith.constant 24 : index
    %73 = vector.load %arg14[%c0_42, %c24_43] : memref<8x32xf32, #tpu.memory_space<vmem>>, vector<8x8xf32>
    %cst_44 = arith.constant dense<0.000000e+00> : vector<8x8xf32>
    %74 = tpu.matmul %71, %72, %cst_44 {dimension_numbers = #tpu.dot_dimension_numbers<[1], [1], [0], [0], [0, 0, 1, 0], [], []>} : vector<8x8xf32>, vector<8x8xf32>, vector<8x8xf32> -> vector<8x8xf32>
    %75 = arith.addf %74, %4 : vector<8x8xf32>
    %cst_45 = arith.constant dense<0xFF800000> : vector<8xf32>
    %76 = vector.multi_reduction <maximumf>, %75, %cst_45 [1] : vector<8x8xf32> to vector<8xf32>
    %77 = vector.shape_cast %76 : vector<8xf32> to vector<8x1xf32>
    %78 = vector.broadcast %77 : vector<8x1xf32> to vector<8x8xf32>
    %79 = arith.subf %75, %78 : vector<8x8xf32>
    %80 = math.exp %79 : vector<8x8xf32>
    %cst_46 = arith.constant dense<0.000000e+00> : vector<8xf32>
    %81 = vector.multi_reduction <add>, %80, %cst_46 [1] : vector<8x8xf32> to vector<8xf32>
    %82 = vector.shape_cast %81 : vector<8xf32> to vector<8x1xf32>
    %83 = tpu.reciprocal %82 {approx = true} : vector<8x1xf32> -> vector<8x1xf32>
    %84 = vector.broadcast %83 : vector<8x1xf32> to vector<8x8xf32>
    %85 = arith.mulf %80, %84 : vector<8x8xf32>
    %c0_47 = arith.constant 0 : index
    %c3 = arith.constant 3 : index
    %c0_48 = arith.constant 0 : index
    %c0_49 = arith.constant 0 : index
    %86 = vector.load %arg12[%c0_47, %c3, %c0_48, %c0_49] : memref<1x4x8x8xf32, #tpu.memory_space<vmem>>, vector<1x1x8x8xf32>
    %87 = vector.shape_cast %86 : vector<1x1x8x8xf32> to vector<8x8xf32>
    %88 = vector.shape_cast %85 : vector<8x8xf32> to vector<1x1x8x8xf32>
    tpu.vector_store %arg12[%c0_47, %c3, %c0_48, %c0_49], %88 {strides = array<i32>} : memref<1x4x8x8xf32, #tpu.memory_space<vmem>>, vector<1x1x8x8xf32>,
    %cst_50 = arith.constant dense<0.000000e+00> : vector<8x8xf32>
    %89 = tpu.matmul %85, %73, %cst_50 {dimension_numbers = #tpu.dot_dimension_numbers<[1], [0], [0], [1], [0, 0, 1, 1], [], []>} : vector<8x8xf32>, vector<8x8xf32>, vector<8x8xf32> -> vector<8x8xf32>
    %c0_51 = arith.constant 0 : index
    %c24_52 = arith.constant 24 : index
    %90 = vector.load %arg15[%c0_51, %c24_52] : memref<8x32xf32, #tpu.memory_space<vmem>>, vector<8x8xf32>
    tpu.vector_store %arg15[%c0_51, %c24_52], %89 {strides = array<i32>} : memref<8x32xf32, #tpu.memory_space<vmem>>, vector<8x8xf32>,
    %c0_53 = arith.constant 0 : index
    %c0_54 = arith.constant 0 : index
    %91 = vector.load %arg15[%c0_53, %c0_54] : memref<8x32xf32, #tpu.memory_space<vmem>>, vector<8x32xf32>
    %c0_55 = arith.constant 0 : index
    %c0_56 = arith.constant 0 : index
    %92 = vector.load %arg9[%c0_55, %c0_56] : memref<32x32xf32, #tpu.memory_space<vmem>>, vector<32x32xf32>
    %cst_57 = arith.constant dense<0.000000e+00> : vector<8x32xf32>
    %93 = tpu.matmul %91, %92, %cst_57 {dimension_numbers = #tpu.dot_dimension_numbers<[1], [0], [0], [1], [0, 0, 1, 1], [], []>} : vector<8x32xf32>, vector<32x32xf32>, vector<8x32xf32> -> vector<8x32xf32>
    %c0_58 = arith.constant 0 : index
    %c0_59 = arith.constant 0 : index
    %94 = vector.load %arg10[%c0_58, %c0_59] : memref<1x32xf32, #tpu.memory_space<vmem>>, vector<1x32xf32>
    %95 = vector.broadcast %94 : vector<1x32xf32> to vector<8x32xf32>
    %96 = arith.addf %93, %95 : vector<8x32xf32>
    %c0_60 = arith.constant 0 : index
    %c0_61 = arith.constant 0 : index
    %c0_62 = arith.constant 0 : index
    %97 = vector.load %arg11[%c0_60, %c0_61, %c0_62] : memref<1x8x32xf32, #tpu.memory_space<vmem>>, vector<1x8x32xf32>
    %98 = vector.shape_cast %97 : vector<1x8x32xf32> to vector<8x32xf32>
    %99 = vector.shape_cast %96 : vector<8x32xf32> to vector<1x8x32xf32>
    tpu.vector_store %arg11[%c0_60, %c0_61, %c0_62], %99 {strides = array<i32>} : memref<1x8x32xf32, #tpu.memory_space<vmem>>, vector<1x8x32xf32>,
    return
  }
  func.func @transform_0(%arg0: i32, %arg1: i32) -> (i32, i32, i32) {
    %c0_i32 = arith.constant 0 : i32
    %c0_i32_0 = arith.constant 0 : i32
    %c0_i32_1 = arith.constant 0 : i32
    return %arg0, %c0_i32, %c0_i32_0 : i32, i32, i32
  }
  func.func @transform_1(%arg0: i32, %arg1: i32) -> (i32, i32, i32) {
    %c0_i32 = arith.constant 0 : i32
    %c0_i32_0 = arith.constant 0 : i32
    %c0_i32_1 = arith.constant 0 : i32
    return %arg0, %c0_i32, %c0_i32_0 : i32, i32, i32
  }
  func.func @transform_2(%arg0: i32, %arg1: i32) -> (i32, i32, i32, i32) {
    %c0_i32 = arith.constant 0 : i32
    %c0_i32_0 = arith.constant 0 : i32
    %c0_i32_1 = arith.constant 0 : i32
    return %arg0, %c0_i32, %arg1, %c0_i32_0 : i32, i32, i32, i32
  }
  func.func @transform_3(%arg0: i32, %arg1: i32) -> (i32, i32) {
    %c0_i32 = arith.constant 0 : i32
    %c0_i32_0 = arith.constant 0 : i32
    %c0_i32_1 = arith.constant 0 : i32
    return %c0_i32, %c0_i32_0 : i32, i32
  }
  func.func @transform_4(%arg0: i32, %arg1: i32) -> (i32, i32) {
    %c0_i32 = arith.constant 0 : i32
    %c0_i32_0 = arith.constant 0 : i32
    %c0_i32_1 = arith.constant 0 : i32
    return %c0_i32, %c0_i32_0 : i32, i32
  }
  func.func @transform_5(%arg0: i32, %arg1: i32) -> (i32, i32) {
    %c0_i32 = arith.constant 0 : i32
    %c0_i32_0 = arith.constant 0 : i32
    %c0_i32_1 = arith.constant 0 : i32
    return %c0_i32, %c0_i32_0 : i32, i32
  }
  func.func @transform_6(%arg0: i32, %arg1: i32) -> (i32, i32) {
    %c0_i32 = arith.constant 0 : i32
    %c0_i32_0 = arith.constant 0 : i32
    %c0_i32_1 = arith.constant 0 : i32
    return %c0_i32, %c0_i32_0 : i32, i32
  }
  func.func @transform_7(%arg0: i32, %arg1: i32) -> (i32, i32) {
    %c0_i32 = arith.constant 0 : i32
    %c0_i32_0 = arith.constant 0 : i32
    %c0_i32_1 = arith.constant 0 : i32
    return %c0_i32, %c0_i32_0 : i32, i32
  }
  func.func @transform_8(%arg0: i32, %arg1: i32) -> (i32, i32) {
    %c0_i32 = arith.constant 0 : i32
    %c0_i32_0 = arith.constant 0 : i32
    %c0_i32_1 = arith.constant 0 : i32
    return %c0_i32, %c0_i32_0 : i32, i32
  }
  func.func @transform_9(%arg0: i32, %arg1: i32) -> (i32, i32, i32) {
    %c0_i32 = arith.constant 0 : i32
    %c0_i32_0 = arith.constant 0 : i32
    return %arg0, %arg1, %c0_i32 : i32, i32, i32
  }
  func.func @transform_10(%arg0: i32, %arg1: i32) -> (i32, i32, i32, i32) {
    %c0_i32 = arith.constant 0 : i32
    %c0_i32_0 = arith.constant 0 : i32
    %c0_i32_1 = arith.constant 0 : i32
    return %arg0, %c0_i32, %arg1, %c0_i32_0 : i32, i32, i32, i32
  }
}

</mosaic_0001>

<llo_original>
// kernel: tpu_custom_call.1
$region0: #{tpu_custom_call.1}
  #allocation0 [shape = 'u32[]', space=smem, size = 0x4, offset = 0x4, fixed_abs, tag = 'smem constant byte address 0x4 - core index']
  #allocation1 [shape = 'u32[144,128]{1,0:T(1,128)}', space=vmem, size = 0x12000, scoped, tag = 'internal scratch']
  #allocation2 [shape = 'f32[8,64]{1,0:T(8,128)}', space=vmem, size = 0x1000, scoped, tag = 'scratch operand']
  #allocation3 [shape = 'f32[8,32]{1,0:T(8,128)}', space=vmem, size = 0x1000, scoped, tag = 'scratch operand']
  #allocation4 [shape = 'f32[8,32]{1,0:T(8,128)}', space=vmem, size = 0x1000, scoped, tag = 'scratch operand']
  %s0 = inlined_call_operand.hbm [shape: f32[2,8,32], index: 0, kind: input, shape index: {}]
  %s1 = inlined_call_operand.hbm [shape: f32[2,8,32], index: 1, kind: input, shape index: {}]
  %s2 = inlined_call_operand.hbm [shape: f32[2,1,8,8], index: 2, kind: input, shape index: {}]
  %s3 = inlined_call_operand.hbm [shape: f32[32,64], index: 3, kind: input, shape index: {}]
  %s4 = inlined_call_operand.vmem [shape: f32[1,64], index: 4, kind: input, shape index: {}]
  %s5 = inlined_call_operand.hbm [shape: f32[32,32], index: 5, kind: input, shape index: {}]
  %s6 = inlined_call_operand.vmem [shape: f32[1,32], index: 6, kind: input, shape index: {}]
  %s7 = inlined_call_operand.hbm [shape: f32[32,32], index: 7, kind: input, shape index: {}]
  %s8 = inlined_call_operand.vmem [shape: f32[1,32], index: 8, kind: input, shape index: {}]
  %s9 = inlined_call_operand.hbm [shape: f32[2,8,32], index: 9, kind: output, shape index: {0}]
  %s10 = inlined_call_operand.hbm [shape: f32[2,4,8,8], index: 10, kind: output, shape index: {1}]
  %11 = xla_tuple %s9, %s10
  %s12 = sld [smem:[#allocation0]]
  $region105: #{tpu_custom_call.1} parent=0
    _
  %s14 = ssub.s32 1, %s12
  %s15 = scalar_select 0, %s14, %s12
  $region1: #{tpu_custom_call.1} parent=0
    #allocation5 [shape = 'u8[8192]{0}', space=vmem, size = 0x2000, scoped, tag = 'input window, operand 0']
    #allocation6 [shape = 's32[2]{0}', space=sflag, size = 0x8, scoped, tag = 'scoped memory for tpu_custom_call.1']
    #allocation7 [shape = 's32[2]{0}', space=sflag, size = 0x8, scoped, tag = 'scoped memory for tpu_custom_call.1']
    #allocation8 [shape = 'u8[8192]{0}', space=vmem, size = 0x2000, scoped, tag = 'input window, operand 1']
    #allocation9 [shape = 's32[2]{0}', space=sflag, size = 0x8, scoped, tag = 'scoped memory for tpu_custom_call.1']
    #allocation10 [shape = 'u8[8192]{0}', space=vmem, size = 0x2000, scoped, tag = 'input window, operand 2']
    #allocation11 [shape = 'u8[16384]{0}', space=vmem, size = 0x4000, scoped, tag = 'input window, operand 3, single buffered']
    #allocation12 [shape = 's32[1]{0}', space=sflag, size = 0x4, scoped, tag = 'scoped memory for tpu_custom_call.1']
    #allocation13 [shape = 'u8[16384]{0}', space=vmem, size = 0x4000, scoped, tag = 'input window, operand 5, single buffered']
    #allocation14 [shape = 'u8[16384]{0}', space=vmem, size = 0x4000, scoped, tag = 'input window, operand 7, single buffered']
    #allocation15 [shape = 's32[1]{0}', space=sflag, size = 0x4, scoped, tag = 'scoped memory for tpu_custom_call.1']
    #allocation16 [shape = 'u8[8192]{0}', space=vmem, size = 0x2000, scoped, tag = 'output window, operand 0']
    #allocation17 [shape = 'u8[32768]{0}', space=vmem, size = 0x8000, scoped, tag = 'output window, operand 1']
    #allocation18 [shape = 's32[2]{0}', space=sflag, size = 0x8, scoped, tag = 'scoped memory for tpu_custom_call.1']
    %16 = vsyncpa [#allocation6], 0
    %s17 = scalar_lea.sflag [#allocation6], 1
    %18 = vsyncpa %s17, 0
    %19 = vsyncpa [#allocation9], 0
    %s20 = scalar_lea.sflag [#allocation9], 1
    %21 = vsyncpa %s20, 0
    %22 = vsyncpa [#allocation12], 0
    %23 = vsyncpa [#allocation15], 0
    %24 = vsyncpa [#allocation7], 0
    %s25 = scalar_lea.sflag [#allocation7], 1
    %26 = vsyncpa %s25, 0
    %27 = vsyncpa [#allocation18], 0
    %s28 = scalar_lea.sflag [#allocation18], 1
    %29 = vsyncpa %s28, 0
    loop: start=0, step=1, limit=4
    $region2: #{tpu_custom_call.1} parent=1 // loop_pre_header
      _
    $region3: #{tpu_custom_call.1} parent=1 // loop_header
      %s31 = sphi 0, %s35
      %p32 = scmp.ge.s32.totalorder %s31, 4
      %s38 = sphi 0, %s50
      %s39 = sphi 0, %s46
      %s40 = sphi 0, %s38
      %s41 = sphi 0, %s39
      %s42 = sphi 0, %s40
      %s43 = sphi 0, %s41
      %s53 = sphi 0, %s55
      %s56 = sphi 0, %s53
      %s57 = sphi 0, %s56
      %s73 = sphi 0, %s57
      %s79 = sphi 0, %s81
      %s82 = sphi 0, %s79
      %s83 = sphi 0, %s82
      %s99 = sphi 0, %s83
      %s107 = sphi 0, %s109
      %s110 = sphi 0, %s107
      %s111 = sphi 0, %s110
      %s127 = sphi 0, %s111
      %s131 = sphi 0, %s131
      %s133 = sphi 0, %s131
      %s134 = sphi 0, %s133
      %s148 = sphi 0, %s134
      %s152 = sphi 0, %s152
      %s154 = sphi 0, %s152
      %s155 = sphi 0, %s154
      %s169 = sphi 0, %s155
      %s173 = sphi 0, %s173
      %s175 = sphi 0, %s173
      %s176 = sphi 0, %s175
      %s190 = sphi 0, %s176
      %s194 = sphi 0, %s194
      %s196 = sphi 0, %s194
      %s197 = sphi 0, %s196
      %s211 = sphi 0, %s197
      %s215 = sphi 0, %s215
      %s217 = sphi 0, %s215
      %s218 = sphi 0, %s217
      %s232 = sphi 0, %s218
      %s236 = sphi 0, %s236
      %s238 = sphi 0, %s236
      %s239 = sphi 0, %s238
      %s253 = sphi 0, %s239
      %s261 = sphi 0, %s263
      %s264 = sphi 0, %s261
      %s265 = sphi 0, %s264
      %s281 = sphi 0, %s265
      %s289 = sphi 0, %s291
      %s292 = sphi 0, %s289
      %s293 = sphi 0, %s292
      %s309 = sphi 0, %s293
    $region4: #{tpu_custom_call.1} parent=1 // loop_header_branch
      %34 = sbr.rel (%p32) target = $region8
    $region5: #{tpu_custom_call.1} parent=1 // loop_body
      %s36 = ssub.s32 %s31, 1
      %s37 = ssub.s32 %s31, 2
      %s44 = sadd.s32 1, %s39
      %p45 = scmp.ge.s32.totalorder %s44, 1
      %s46 = scalar_select %p45, 0, %s44
      %s47 = sadd.s32 1, %s38
      %s48 = scalar_select %p45, %s47, %s38
      %p49 = scmp.ge.s32.totalorder %s48, 2
      %s50 = scalar_select %p49, 0, %s48
      %s51 = ssub.s32 %s38, %s50
      %p52 = scmp.eq.s32.totalorder %s51, 0
      %s54 = sadd.s32 %s53, 1
      %s55 = scalar_select %p52, %s53, %s54
      %p58 = pneg %p52
      %p59 = scmp.eq.s32.totalorder %s31, 1
      %p60 = por %p58, %p59
      %p61 = scmp.ne.s32.totalorder %s53, %s56
      %p62 = scmp.eq.s32.totalorder %s31, 0
      %p63 = por %p61, %p62
      %p64 = scmp.ne.s32.totalorder %s53, %s56
      %p65 = scmp.eq.s32.totalorder %s36, 1
      %p66 = por %p64, %p65
      %p67 = scmp.ne.s32.totalorder %s56, %s57
      %p68 = scmp.eq.s32.totalorder %s36, 0
      %p69 = por %p67, %p68
      %p70 = scmp.ne.s32.totalorder %s56, %s57
      %p71 = scmp.eq.s32.totalorder %s37, 1
      %p72 = por %p70, %p71
      %p74 = scmp.ne.s32.totalorder %s57, %s73
      %p75 = scmp.eq.s32.totalorder %s37, 0
      %p76 = por %p74, %p75
      %s77 = ssub.s32 %s38, %s50
      %p78 = scmp.eq.s32.totalorder %s77, 0
      %s80 = sadd.s32 %s79, 1
      %s81 = scalar_select %p78, %s79, %s80
      %p84 = pneg %p78
      %p85 = scmp.eq.s32.totalorder %s31, 1
      %p86 = por %p84, %p85
      %p87 = scmp.ne.s32.totalorder %s79, %s82
      %p88 = scmp.eq.s32.totalorder %s31, 0
      %p89 = por %p87, %p88
      %p90 = scmp.ne.s32.totalorder %s79, %s82
      %p91 = scmp.eq.s32.totalorder %s36, 1
      %p92 = por %p90, %p91
      %p93 = scmp.ne.s32.totalorder %s82, %s83
      %p94 = scmp.eq.s32.totalorder %s36, 0
      %p95 = por %p93, %p94
      %p96 = scmp.ne.s32.totalorder %s82, %s83
      %p97 = scmp.eq.s32.totalorder %s37, 1
      %p98 = por %p96, %p97
      %p100 = scmp.ne.s32.totalorder %s83, %s99
      %p101 = scmp.eq.s32.totalorder %s37, 0
      %p102 = por %p100, %p101
      %s103 = ssub.s32 %s38, %s50
      %s104 = ssub.s32 %s39, %s46
      %s105 = sor.u32 %s103, %s104
      %p106 = scmp.eq.s32.totalorder %s105, 0
      %s108 = sadd.s32 %s107, 1
      %s109 = scalar_select %p106, %s107, %s108
      %p112 = pneg %p106
      %p113 = scmp.eq.s32.totalorder %s31, 1
      %p114 = por %p112, %p113
      %p115 = scmp.ne.s32.totalorder %s107, %s110
      %p116 = scmp.eq.s32.totalorder %s31, 0
      %p117 = por %p115, %p116
      %p118 = scmp.ne.s32.totalorder %s107, %s110
      %p119 = scmp.eq.s32.totalorder %s36, 1
      %p120 = por %p118, %p119
      %p121 = scmp.ne.s32.totalorder %s110, %s111
      %p122 = scmp.eq.s32.totalorder %s36, 0
      %p123 = por %p121, %p122
      %p124 = scmp.ne.s32.totalorder %s110, %s111
      %p125 = scmp.eq.s32.totalorder %s37, 1
      %p126 = por %p124, %p125
      %p128 = scmp.ne.s32.totalorder %s111, %s127
      %p129 = scmp.eq.s32.totalorder %s37, 0
      %p130 = por %p128, %p129
      %s132 = sadd.s32 %s131, 1
      %p135 = scmp.eq.s32.totalorder %s31, 1
      %p136 = scmp.ne.s32.totalorder %s131, %s133
      %p137 = scmp.eq.s32.totalorder %s31, 0
      %p138 = por %p136, %p137
      %p139 = scmp.ne.s32.totalorder %s131, %s133
      %p140 = scmp.eq.s32.totalorder %s36, 1
      %p141 = por %p139, %p140
      %p142 = scmp.ne.s32.totalorder %s133, %s134
      %p143 = scmp.eq.s32.totalorder %s36, 0
      %p144 = por %p142, %p143
      %p145 = scmp.ne.s32.totalorder %s133, %s134
      %p146 = scmp.eq.s32.totalorder %s37, 1
      %p147 = por %p145, %p146
      %p149 = scmp.ne.s32.totalorder %s134, %s148
      %p150 = scmp.eq.s32.totalorder %s37, 0
      %p151 = por %p149, %p150
      %s153 = sadd.s32 %s152, 1
      %p156 = scmp.eq.s32.totalorder %s31, 1
      %p157 = scmp.ne.s32.totalorder %s152, %s154
      %p158 = scmp.eq.s32.totalorder %s31, 0
      %p159 = por %p157, %p158
      %p160 = scmp.ne.s32.totalorder %s152, %s154
      %p161 = scmp.eq.s32.totalorder %s36, 1
      %p162 = por %p160, %p161
      %p163 = scmp.ne.s32.totalorder %s154, %s155
      %p164 = scmp.eq.s32.totalorder %s36, 0
      %p165 = por %p163, %p164
      %p166 = scmp.ne.s32.totalorder %s154, %s155
      %p167 = scmp.eq.s32.totalorder %s37, 1
      %p168 = por %p166, %p167
      %p170 = scmp.ne.s32.totalorder %s155, %s169
      %p171 = scmp.eq.s32.totalorder %s37, 0
      %p172 = por %p170, %p171
      %s174 = sadd.s32 %s173, 1
      %p177 = scmp.eq.s32.totalorder %s31, 1
      %p178 = scmp.ne.s32.totalorder %s173, %s175
      %p179 = scmp.eq.s32.totalorder %s31, 0
      %p180 = por %p178, %p179
      %p181 = scmp.ne.s32.totalorder %s173, %s175
      %p182 = scmp.eq.s32.totalorder %s36, 1
      %p183 = por %p181, %p182
      %p184 = scmp.ne.s32.totalorder %s175, %s176
      %p185 = scmp.eq.s32.totalorder %s36, 0
      %p186 = por %p184, %p185
      %p187 = scmp.ne.s32.totalorder %s175, %s176
      %p188 = scmp.eq.s32.totalorder %s37, 1
      %p189 = por %p187, %p188
      %p191 = scmp.ne.s32.totalorder %s176, %s190
      %p192 = scmp.eq.s32.totalorder %s37, 0
      %p193 = por %p191, %p192
      %s195 = sadd.s32 %s194, 1
      %p198 = scmp.eq.s32.totalorder %s31, 1
      %p199 = scmp.ne.s32.totalorder %s194, %s196
      %p200 = scmp.eq.s32.totalorder %s31, 0
      %p201 = por %p199, %p200
      %p202 = scmp.ne.s32.totalorder %s194, %s196
      %p203 = scmp.eq.s32.totalorder %s36, 1
      %p204 = por %p202, %p203
      %p205 = scmp.ne.s32.totalorder %s196, %s197
      %p206 = scmp.eq.s32.totalorder %s36, 0
      %p207 = por %p205, %p206
      %p208 = scmp.ne.s32.totalorder %s196, %s197
      %p209 = scmp.eq.s32.totalorder %s37, 1
      %p210 = por %p208, %p209
      %p212 = scmp.ne.s32.totalorder %s197, %s211
      %p213 = scmp.eq.s32.totalorder %s37, 0
      %p214 = por %p212, %p213
      %s216 = sadd.s32 %s215, 1
      %p219 = scmp.eq.s32.totalorder %s31, 1
      %p220 = scmp.ne.s32.totalorder %s215, %s217
      %p221 = scmp.eq.s32.totalorder %s31, 0
      %p222 = por %p220, %p221
      %p223 = scmp.ne.s32.totalorder %s215, %s217
      %p224 = scmp.eq.s32.totalorder %s36, 1
      %p225 = por %p223, %p224
      %p226 = scmp.ne.s32.totalorder %s217, %s218
      %p227 = scmp.eq.s32.totalorder %s36, 0
      %p228 = por %p226, %p227
      %p229 = scmp.ne.s32.totalorder %s217, %s218
      %p230 = scmp.eq.s32.totalorder %s37, 1
      %p231 = por %p229, %p230
      %p233 = scmp.ne.s32.totalorder %s218, %s232
      %p234 = scmp.eq.s32.totalorder %s37, 0
      %p235 = por %p233, %p234
      %s237 = sadd.s32 %s236, 1
      %p240 = scmp.eq.s32.totalorder %s31, 1
      %p241 = scmp.ne.s32.totalorder %s236, %s238
      %p242 = scmp.eq.s32.totalorder %s31, 0
      %p243 = por %p241, %p242
      %p244 = scmp.ne.s32.totalorder %s236, %s238
      %p245 = scmp.eq.s32.totalorder %s36, 1
      %p246 = por %p244, %p245
      %p247 = scmp.ne.s32.totalorder %s238, %s239
      %p248 = scmp.eq.s32.totalorder %s36, 0
      %p249 = por %p247, %p248
      %p250 = scmp.ne.s32.totalorder %s238, %s239
      %p251 = scmp.eq.s32.totalorder %s37, 1
      %p252 = por %p250, %p251
      %p254 = scmp.ne.s32.totalorder %s239, %s253
      %p255 = scmp.eq.s32.totalorder %s37, 0
      %p256 = por %p254, %p255
      %s257 = ssub.s32 %s38, %s50
      %s258 = ssub.s32 %s39, %s46
      %s259 = sor.u32 %s257, %s258
      %p260 = scmp.eq.s32.totalorder %s259, 0
      %s262 = sadd.s32 %s261, 1
      %s263 = scalar_select %p260, %s261, %s262
      %p266 = pneg %p260
      %p267 = scmp.eq.s32.totalorder %s31, 1
      %p268 = por %p266, %p267
      %p269 = scmp.ne.s32.totalorder %s261, %s264
      %p270 = scmp.eq.s32.totalorder %s31, 0
      %p271 = por %p269, %p270
      %p272 = scmp.ne.s32.totalorder %s261, %s264
      %p273 = scmp.eq.s32.totalorder %s36, 1
      %p274 = por %p272, %p273
      %p275 = scmp.ne.s32.totalorder %s264, %s265
      %p276 = scmp.eq.s32.totalorder %s36, 0
      %p277 = por %p275, %p276
      %p278 = scmp.ne.s32.totalorder %s264, %s265
      %p279 = scmp.eq.s32.totalorder %s37, 1
      %p280 = por %p278, %p279
      %p282 = scmp.ne.s32.totalorder %s265, %s281
      %p283 = scmp.eq.s32.totalorder %s37, 0
      %p284 = por %p282, %p283
      %s285 = ssub.s32 %s38, %s50
      %s286 = ssub.s32 %s39, %s46
      %s287 = sor.u32 %s285, %s286
      %p288 = scmp.eq.s32.totalorder %s287, 0
      %s290 = sadd.s32 %s289, 1
      %s291 = scalar_select %p288, %s289, %s290
      %p294 = pneg %p288
      %p295 = scmp.eq.s32.totalorder %s31, 1
      %p296 = por %p294, %p295
      %p297 = scmp.ne.s32.totalorder %s289, %s292
      %p298 = scmp.eq.s32.totalorder %s31, 0
      %p299 = por %p297, %p298
      %p300 = scmp.ne.s32.totalorder %s289, %s292
      %p301 = scmp.eq.s32.totalorder %s36, 1
      %p302 = por %p300, %p301
      %p303 = scmp.ne.s32.totalorder %s292, %s293
      %p304 = scmp.eq.s32.totalorder %s36, 0
      %p305 = por %p303, %p304
      %p306 = scmp.ne.s32.totalorder %s292, %s293
      %p307 = scmp.eq.s32.totalorder %s37, 1
      %p308 = por %p306, %p307
      %p310 = scmp.ne.s32.totalorder %s293, %s309
      %p311 = scmp.eq.s32.totalorder %s37, 0
      %p312 = por %p310, %p311
      %p313 = scmp.le.s32.totalorder 1, %s31
      %p314 = scmp.lt.s32.totalorder %s31, 3
      %p315 = pnand %p313, %p314
      %p316 = pneg %p315
      // Predicated region
      $region9: #{tpu_custom_call.1} parent=5 // pred_check
        _
      $region10: #{tpu_custom_call.1} parent=5 // pred_check_branch
        %318 = sbr.rel (%p315) target = $region12
      $region11: #{tpu_custom_call.1} parent=5 // pred_region
        %s319 = ssub.s32 %s31, 1
        // Predicated region
        $region13: #{tpu_custom_call.1} parent=11 // pred_check
          %p320 = pneg %p144
        $region14: #{tpu_custom_call.1} parent=11 // pred_check_branch
          %322 = sbr.rel (%p320) target = $region16
        $region15: #{tpu_custom_call.1} parent=11 // pred_region
          %s324 = ssub.s32 512, 512
          %325 = vsyncadd [#allocation12], %s324
          %s326 = sshll.u32 [#allocation11], 4
          %s327 = int_to_ptr.vmem [resolvable:$true] %s326
          %332 = dma.hbm_to_vmem [thread:$0]  %s3, 512, %s327, [#allocation12], 128, 128, 8
        $region16: #{tpu_custom_call.1} parent=11 // pred_fallthru
          _
        // Predicated region
        $region17: #{tpu_custom_call.1} parent=11 // pred_check
          %p333 = pneg %p165
        $region18: #{tpu_custom_call.1} parent=11 // pred_check_branch
          %335 = sbr.rel (%p333) target = $region20
        $region19: #{tpu_custom_call.1} parent=11 // pred_region
          _
        $region20: #{tpu_custom_call.1} parent=11 // pred_fallthru
          _
        // Predicated region
        $region21: #{tpu_custom_call.1} parent=11 // pred_check
          %p336 = pneg %p186
        $region22: #{tpu_custom_call.1} parent=11 // pred_check_branch
          %338 = sbr.rel (%p336) target = $region24
        $region23: #{tpu_custom_call.1} parent=11 // pred_region
          %s340 = ssub.s32 512, 512
          %341 = vsyncadd [#allocation12], %s340
          %s342 = sshll.u32 [#allocation13], 4
          %s343 = int_to_ptr.vmem [resolvable:$true] %s342
          %348 = dma.hbm_to_vmem [thread:$0]  %s5, 512, %s343, [#allocation12], 128, 128, 8
        $region24: #{tpu_custom_call.1} parent=11 // pred_fallthru
          _
        // Predicated region
        $region25: #{tpu_custom_call.1} parent=11 // pred_check
          %p349 = pneg %p207
        $region26: #{tpu_custom_call.1} parent=11 // pred_check_branch
          %351 = sbr.rel (%p349) target = $region28
        $region27: #{tpu_custom_call.1} parent=11 // pred_region
          _
        $region28: #{tpu_custom_call.1} parent=11 // pred_fallthru
          _
        // Predicated region
        $region29: #{tpu_custom_call.1} parent=11 // pred_check
          %p352 = pneg %p228
        $region30: #{tpu_custom_call.1} parent=11 // pred_check_branch
          %354 = sbr.rel (%p352) target = $region32
        $region31: #{tpu_custom_call.1} parent=11 // pred_region
          %s356 = ssub.s32 512, 512
          %357 = vsyncadd [#allocation15], %s356
          %s358 = sshll.u32 [#allocation14], 4
          %s359 = int_to_ptr.vmem [resolvable:$true] %s358
          %364 = dma.hbm_to_vmem [thread:$0]  %s7, 512, %s359, [#allocation15], 128, 128, 8
        $region32: #{tpu_custom_call.1} parent=11 // pred_fallthru
          _
        // Predicated region
        $region33: #{tpu_custom_call.1} parent=11 // pred_check
          %p365 = pneg %p249
        $region34: #{tpu_custom_call.1} parent=11 // pred_check_branch
          %367 = sbr.rel (%p365) target = $region36
        $region35: #{tpu_custom_call.1} parent=11 // pred_region
          _
        $region36: #{tpu_custom_call.1} parent=11 // pred_fallthru
          _
      $region12: #{tpu_custom_call.1} parent=5 // pred_fallthru
        _
      %p368 = scmp.lt.s32.totalorder %s31, 2
      // Predicated region
      $region37: #{tpu_custom_call.1} parent=5 // pred_check
        %p369 = pneg %p368
      $region38: #{tpu_custom_call.1} parent=5 // pred_check_branch
        %371 = sbr.rel (%p369) target = $region40
      $region39: #{tpu_custom_call.1} parent=5 // pred_region
        // Predicated region
        $region41: #{tpu_custom_call.1} parent=39 // pred_check
          %p372 = pneg %p63
        $region42: #{tpu_custom_call.1} parent=39 // pred_check_branch
          %374 = sbr.rel (%p372) target = $region44
        $region43: #{tpu_custom_call.1} parent=39 // pred_region
          %s375 = sand.u32 %s53, 1
          %s376 = scalar_lea.sflag [#allocation6], %s375
          %s377 = sand.u32 %s53, 1
          %s378 = smul.addr %s377, 8
          %s379 = scalar_lea.vmem [#allocation5], %s378
          %s381 = ssub.s32 128, 128
          %382 = vsyncadd %s376, %s381
          %s383 = smul.addr %s38, 128
          %s384 = scalar_lea.hbm %s0, %s383
          %s386 = sshll.u32 %s379, 4
          %s387 = int_to_ptr.vmem [resolvable:$true] %s386
          %389 = dma.hbm_to_vmem [thread:$0]  %s384, 128, %s387, %s376
        $region44: #{tpu_custom_call.1} parent=39 // pred_fallthru
          _
        // Predicated region
        $region45: #{tpu_custom_call.1} parent=39 // pred_check
          %p390 = pneg %p89
        $region46: #{tpu_custom_call.1} parent=39 // pred_check_branch
          %392 = sbr.rel (%p390) target = $region48
        $region47: #{tpu_custom_call.1} parent=39 // pred_region
          %s393 = sand.u32 %s31, 1
          %s394 = scalar_lea.sflag [#allocation9], %s393
          %s395 = sand.u32 %s79, 1
          %s396 = smul.addr %s395, 8
          %s397 = scalar_lea.vmem [#allocation8], %s396
          %s399 = ssub.s32 128, 128
          %400 = vsyncadd %s394, %s399
          %s401 = smul.addr %s38, 128
          %s402 = scalar_lea.hbm %s1, %s401
          %s404 = sshll.u32 %s397, 4
          %s405 = int_to_ptr.vmem [resolvable:$true] %s404
          %407 = dma.hbm_to_vmem [thread:$0]  %s402, 128, %s405, %s394
        $region48: #{tpu_custom_call.1} parent=39 // pred_fallthru
          _
        // Predicated region
        $region49: #{tpu_custom_call.1} parent=39 // pred_check
          %p408 = pneg %p117
        $region50: #{tpu_custom_call.1} parent=39 // pred_check_branch
          %410 = sbr.rel (%p408) target = $region52
        $region51: #{tpu_custom_call.1} parent=39 // pred_region
          %s411 = sand.u32 %s31, 1
          %s412 = scalar_lea.sflag [#allocation9], %s411
          %s413 = sand.u32 %s107, 1
          %s414 = smul.addr %s413, 8
          %s415 = scalar_lea.vmem [#allocation10], %s414
          %s417 = ssub.s32 128, 128
          %418 = vsyncadd %s412, %s417
          %s419 = sadd.s32 %s39, %s38
          %s420 = smul.addr %s419, 128
          %s421 = scalar_lea.hbm %s2, %s420
          %s423 = sshll.u32 %s415, 4
          %s424 = int_to_ptr.vmem [resolvable:$true] %s423
          %426 = dma.hbm_to_vmem [thread:$0]  %s421, 128, %s424, %s412
        $region52: #{tpu_custom_call.1} parent=39 // pred_fallthru
          _
      $region40: #{tpu_custom_call.1} parent=5 // pred_fallthru
        _
      %p427 = scmp.le.s32.totalorder 1, %s31
      %p428 = scmp.lt.s32.totalorder %s31, 3
      %p429 = pnand %p427, %p428
      %p430 = pneg %p429
      // Predicated region
      $region53: #{tpu_custom_call.1} parent=5 // pred_check
        _
      $region54: #{tpu_custom_call.1} parent=5 // pred_check_branch
        %432 = sbr.rel (%p429) target = $region56
      $region55: #{tpu_custom_call.1} parent=5 // pred_region
        %s433 = ssub.s32 %s31, 1
        %s434 = sand.u32 %s56, 1
        %s435 = scalar_lea.sflag [#allocation6], %s434
        %s436 = sand.u32 %s56, 1
        %s437 = smul.addr %s436, 8
        %s438 = scalar_lea.vmem [#allocation5], %s437
        // Predicated region
        $region57: #{tpu_custom_call.1} parent=55 // pred_check
          %p439 = pneg %p69
        $region58: #{tpu_custom_call.1} parent=55 // pred_check_branch
          %441 = sbr.rel (%p439) target = $region60
        $region59: #{tpu_custom_call.1} parent=55 // pred_region
          %442 = dma.done %s435, 128
        $region60: #{tpu_custom_call.1} parent=55 // pred_fallthru
          _
        %s443 = sand.u32 %s36, 1
        %s444 = scalar_lea.sflag [#allocation9], %s443
        %s445 = sand.u32 %s82, 1
        %s446 = smul.addr %s445, 8
        %s447 = scalar_lea.vmem [#allocation8], %s446
        // Predicated region
        $region61: #{tpu_custom_call.1} parent=55 // pred_check
          %p448 = pneg %p95
        $region62: #{tpu_custom_call.1} parent=55 // pred_check_branch
          %450 = sbr.rel (%p448) target = $region64
        $region63: #{tpu_custom_call.1} parent=55 // pred_region
          %451 = dma.done %s444, 128
        $region64: #{tpu_custom_call.1} parent=55 // pred_fallthru
          _
        %s452 = sand.u32 %s36, 1
        %s453 = scalar_lea.sflag [#allocation9], %s452
        %s454 = sand.u32 %s110, 1
        %s455 = smul.addr %s454, 8
        %s456 = scalar_lea.vmem [#allocation10], %s455
        // Predicated region
        $region65: #{tpu_custom_call.1} parent=55 // pred_check
          %p457 = pneg %p123
        $region66: #{tpu_custom_call.1} parent=55 // pred_check_branch
          %459 = sbr.rel (%p457) target = $region68
        $region67: #{tpu_custom_call.1} parent=55 // pred_region
          %460 = dma.done %s453, 128
        $region68: #{tpu_custom_call.1} parent=55 // pred_fallthru
          _
        // Predicated region
        $region69: #{tpu_custom_call.1} parent=55 // pred_check
          %p461 = pneg %p144
        $region70: #{tpu_custom_call.1} parent=55 // pred_check_branch
          %463 = sbr.rel (%p461) target = $region72
        $region71: #{tpu_custom_call.1} parent=55 // pred_region
          %464 = dma.done [#allocation12], 512
        $region72: #{tpu_custom_call.1} parent=55 // pred_fallthru
          _
        // Predicated region
        $region73: #{tpu_custom_call.1} parent=55 // pred_check
          %p465 = pneg %p186
        $region74: #{tpu_custom_call.1} parent=55 // pred_check_branch
          %467 = sbr.rel (%p465) target = $region76
        $region75: #{tpu_custom_call.1} parent=55 // pred_region
          %468 = dma.done [#allocation12], 512
        $region76: #{tpu_custom_call.1} parent=55 // pred_fallthru
          _
        // Predicated region
        $region77: #{tpu_custom_call.1} parent=55 // pred_check
          %p469 = pneg %p228
        $region78: #{tpu_custom_call.1} parent=55 // pred_check_branch
          %471 = sbr.rel (%p469) target = $region80
        $region79: #{tpu_custom_call.1} parent=55 // pred_region
          %472 = dma.done [#allocation15], 512
        $region80: #{tpu_custom_call.1} parent=55 // pred_fallthru
          _
        %s473 = sand.u32 %s56, 1
        %s474 = scalar_lea.sflag [#allocation6], %s473
        %s475 = sand.u32 %s56, 1
        %s476 = smul.addr %s475, 8
        %s477 = scalar_lea.vmem [#allocation5], %s476
        %p478 = pneg %p69
        %p479 = pneg %p66
        %s480 = sand.u32 %s36, 1
        %s481 = scalar_lea.sflag [#allocation9], %s480
        %s482 = sand.u32 %s82, 1
        %s483 = smul.addr %s482, 8
        %s484 = scalar_lea.vmem [#allocation8], %s483
        %p485 = pneg %p95
        %p486 = pneg %p92
        %s487 = sand.u32 %s36, 1
        %s488 = scalar_lea.sflag [#allocation9], %s487
        %s489 = sand.u32 %s110, 1
        %s490 = smul.addr %s489, 8
        %s491 = scalar_lea.vmem [#allocation10], %s490
        %p492 = pneg %p123
        %p493 = pneg %p120
        %p494 = pneg %p144
        %p495 = pneg %p141
        %p496 = pneg %p165
        %p497 = pneg %p162
        %p498 = pneg %p186
        %p499 = pneg %p183
        %p500 = pneg %p207
        %p501 = pneg %p204
        %p502 = pneg %p228
        %p503 = pneg %p225
        %p504 = pneg %p249
        %p505 = pneg %p246
        %p506 = pneg %p277
        %p507 = pneg %p274
        %s508 = sand.u32 %s264, 1
        %s509 = scalar_lea.sflag [#allocation7], %s508
        %s510 = sand.u32 %s264, 1
        %s511 = smul.addr %s510, 8
        %s512 = scalar_lea.vmem [#allocation16], %s511
        %p513 = pneg %p305
        %p514 = pneg %p302
        %s515 = sand.u32 %s292, 1
        %s516 = scalar_lea.sflag [#allocation18], %s515
        %s517 = sand.u32 %s292, 1
        %s518 = smul.addr %s517, 32
        %s519 = scalar_lea.vmem [#allocation17], %s518
        %p520 = scmp.eq.s32.totalorder %s41, 0
        // Predicated region
        $region81: #{tpu_custom_call.1} parent=55 // pred_check
          %p521 = pneg %p520
        $region82: #{tpu_custom_call.1} parent=55 // pred_check_branch
          %523 = sbr.rel (%p521) target = $region84
        $region83: #{tpu_custom_call.1} parent=55 // pred_region
          %v524 = vld [vmem:[%s438] sm:$0xff]
          %v525 = vld [vmem:[%s447] sm:$0xff]
          %v526 = vadd.f32 %v524, %v525
          %v527 = vld [vmem:[#allocation11] sm:$0xff]
          %v528 = vld [vmem:[#allocation11 + $0x8] sm:$0xff]
          %v529 = vld [vmem:[#allocation11 + $0x10] sm:$0xff]
          %v530 = vld [vmem:[#allocation11 + $0x18] sm:$0xff]
          %v531 = vld [vmem:[%s4] sm:$0x1]
          %v533 = vlaneseq
          %v534 = vshrl.u32 %v533, 7
          %v535 = vsub.s32 0, %v534
          %v536 = vrot.slane %v531, %v535
          %vm538 = vcmask 261120
          %v540 = vsel %vm538, %v526, 0
          %542 = vmatprep.subr.mxu0 0.0
          %543 = vmatpush1.msra.mxu0 0.0
          %544 = vmatprep.subr.mxu0 0.0
          %545 = vmatpush1.msra.mxu0 0.0
          %546 = vmatprep.subr.mxu0 0.0
          %547 = vmatpush1.msra.mxu0 0.0
          %548 = vmatprep.subr.mxu0 0.0
          %549 = vmatpush1.msra.mxu0 0.0
          %550 = vmatprep.subr.mxu0 0.0
          %551 = vmatpush1.msra.mxu0 0.0
          %552 = vmatprep.subr.mxu0 0.0
          %553 = vmatpush1.msra.mxu0 0.0
          %554 = vmatprep.subr.mxu0 0.0
          %555 = vmatpush1.msra.mxu0 0.0
          %556 = vmatprep.subr.mxu0 0.0
          %557 = vmatpush1.msra.mxu0 0.0
          %558 = vmatprep.subr.mxu0 0.0
          %559 = vmatpush1.msra.mxu0 0.0
          %560 = vmatprep.subr.mxu0 0.0
          %561 = vmatpush1.msra.mxu0 0.0
          %562 = vmatprep.subr.mxu0 0.0
          %563 = vmatpush1.msra.mxu0 0.0
          %564 = vmatprep.subr.mxu0 0.0
          %565 = vmatpush1.msra.mxu0 0.0
          %566 = vmatprep.subr.mxu0 0.0
          %567 = vmatpush1.msra.mxu0 %v530
          %568 = vmatprep.subr.mxu0 0.0
          %569 = vmatpush1.msra.mxu0 %v529
          %570 = vmatprep.subr.mxu0 0.0
          %571 = vmatpush1.msra.mxu0 %v528
          %572 = vmatprep.subr.mxu0 0.0
          %573 = vmatpush1.msra.mxu0 %v527
          %574 = vmatprep.subr.mxu0 0.0
          %575 = vmatpush2.msra.mxu0 0.0
          %576 = vmatprep.subr.mxu0 0.0
          %577 = vmatpush2.msra.mxu0 0.0
          %578 = vmatprep.subr.mxu0 0.0
          %579 = vmatpush2.msra.mxu0 0.0
          %580 = vmatprep.subr.mxu0 0.0
          %581 = vmatpush2.msra.mxu0 0.0
          %582 = vmatprep.subr.mxu0 0.0
          %583 = vmatpush2.msra.mxu0 0.0
          %584 = vmatprep.subr.mxu0 0.0
          %585 = vmatpush2.msra.mxu0 0.0
          %586 = vmatprep.subr.mxu0 0.0
          %587 = vmatpush2.msra.mxu0 0.0
          %588 = vmatprep.subr.mxu0 0.0
          %589 = vmatpush2.msra.mxu0 0.0
          %590 = vmatprep.subr.mxu0 0.0
          %591 = vmatpush2.msra.mxu0 0.0
          %592 = vmatprep.subr.mxu0 0.0
          %593 = vmatpush2.msra.mxu0 0.0
          %594 = vmatprep.subr.mxu0 0.0
          %595 = vmatpush2.msra.mxu0 0.0
          %596 = vmatprep.subr.mxu0 0.0
          %597 = vmatpush2.msra.mxu0 0.0
          %598 = vmatprep.subr.mxu0 0.0
          %599 = vmatpush2.msra.mxu0 0.0
          %600 = vmatprep.subr.mxu0 0.0
          %601 = vmatpush2.msra.mxu0 0.0
          %602 = vmatprep.subr.mxu0 0.0
          %603 = vmatpush2.msra.mxu0 0.0
          %604 = vmatprep.subr.mxu0 0.0
          %605 = vmatpush2.msra.mxu0 0.0
          %606 = vmatprep.mubr.f32.mxu0 0.0
          %607 = vmatmul.mubr.f32.gmra.mxu0 %v540
          %v608 = vpop.f32.mrf.mxu0
          %v609 = vadd.f32 %v536, %v608
          %v610 = vpop.f32.mrf.mxu0
          %611 = vdwg.mxu0
          %vm612 = vcmask 523264
          %613 = vst.msk [vmem:[#allocation2] sm:$0xff] %vm612, %v609
          %v614 = vld [vmem:[#allocation13] sm:$0xff]
          %v615 = vld [vmem:[#allocation13 + $0x8] sm:$0xff]
          %v616 = vld [vmem:[#allocation13 + $0x10] sm:$0xff]
          %v617 = vld [vmem:[#allocation13 + $0x18] sm:$0xff]
          %v618 = vld [vmem:[%s6] sm:$0x1]
          %v620 = vlaneseq
          %v621 = vshrl.u32 %v620, 7
          %v622 = vsub.s32 0, %v621
          %v623 = vrot.slane %v618, %v622
          %v626 = vsel %vm538, %v524, 0
          %628 = vmatprep.subr.mxu0 0.0
          %629 = vmatpush1.msra.mxu0 0.0
          %630 = vmatprep.subr.mxu0 0.0
          %631 = vmatpush1.msra.mxu0 0.0
          %632 = vmatprep.subr.mxu0 0.0
          %633 = vmatpush1.msra.mxu0 0.0
          %634 = vmatprep.subr.mxu0 0.0
          %635 = vmatpush1.msra.mxu0 0.0
          %636 = vmatprep.subr.mxu0 0.0
          %637 = vmatpush1.msra.mxu0 0.0
          %638 = vmatprep.subr.mxu0 0.0
          %639 = vmatpush1.msra.mxu0 0.0
          %640 = vmatprep.subr.mxu0 0.0
          %641 = vmatpush1.msra.mxu0 0.0
          %642 = vmatprep.subr.mxu0 0.0
          %643 = vmatpush1.msra.mxu0 0.0
          %644 = vmatprep.subr.mxu0 0.0
          %645 = vmatpush1.msra.mxu0 0.0
          %646 = vmatprep.subr.mxu0 0.0
          %647 = vmatpush1.msra.mxu0 0.0
          %648 = vmatprep.subr.mxu0 0.0
          %649 = vmatpush1.msra.mxu0 0.0
          %650 = vmatprep.subr.mxu0 0.0
          %651 = vmatpush1.msra.mxu0 0.0
          %652 = vmatprep.subr.mxu0 0.0
          %653 = vmatpush1.msra.mxu0 %v617
          %654 = vmatprep.subr.mxu0 0.0
          %655 = vmatpush1.msra.mxu0 %v616
          %656 = vmatprep.subr.mxu0 0.0
          %657 = vmatpush1.msra.mxu0 %v615
          %658 = vmatprep.subr.mxu0 0.0
          %659 = vmatpush1.msra.mxu0 %v614
          %660 = vmatprep.subr.mxu0 0.0
          %661 = vmatpush2.msra.mxu0 0.0
          %662 = vmatprep.subr.mxu0 0.0
          %663 = vmatpush2.msra.mxu0 0.0
          %664 = vmatprep.subr.mxu0 0.0
          %665 = vmatpush2.msra.mxu0 0.0
          %666 = vmatprep.subr.mxu0 0.0
          %667 = vmatpush2.msra.mxu0 0.0
          %668 = vmatprep.subr.mxu0 0.0
          %669 = vmatpush2.msra.mxu0 0.0
          %670 = vmatprep.subr.mxu0 0.0
          %671 = vmatpush2.msra.mxu0 0.0
          %672 = vmatprep.subr.mxu0 0.0
          %673 = vmatpush2.msra.mxu0 0.0
          %674 = vmatprep.subr.mxu0 0.0
          %675 = vmatpush2.msra.mxu0 0.0
          %676 = vmatprep.subr.mxu0 0.0
          %677 = vmatpush2.msra.mxu0 0.0
          %678 = vmatprep.subr.mxu0 0.0
          %679 = vmatpush2.msra.mxu0 0.0
          %680 = vmatprep.subr.mxu0 0.0
          %681 = vmatpush2.msra.mxu0 0.0
          %682 = vmatprep.subr.mxu0 0.0
          %683 = vmatpush2.msra.mxu0 0.0
          %684 = vmatprep.subr.mxu0 0.0
          %685 = vmatpush2.msra.mxu0 0.0
          %686 = vmatprep.subr.mxu0 0.0
          %687 = vmatpush2.msra.mxu0 0.0
          %688 = vmatprep.subr.mxu0 0.0
          %689 = vmatpush2.msra.mxu0 0.0
          %690 = vmatprep.subr.mxu0 0.0
          %691 = vmatpush2.msra.mxu0 0.0
          %692 = vmatprep.mubr.f32.mxu0 0.0
          %693 = vmatmul.mubr.f32.gmra.mxu0 %v626
          %v694 = vpop.f32.mrf.mxu0
          %v695 = vadd.f32 %v623, %v694
          %v696 = vpop.f32.mrf.mxu0
          %697 = vdwg.mxu0
          %698 = vst.msk [vmem:[#allocation3] sm:$0xff] %vm538, %v695
        $region84: #{tpu_custom_call.1} parent=55 // pred_fallthru
          _
        %v699 = vld [vmem:[%s456] sm:$0xff]
        %s700 = smul.u32 %s41, 8
        %s701 = scalar_lea.vmem [#allocation2], %s700
        %v702 = vld [vmem:[%s701] sm:$0xff]
        %v703 = vld [vmem:[#allocation2] sm:$0xff]
        %v704 = vld [vmem:[#allocation3] sm:$0xff]
        %706 = vrot.lane.b32.xlu0 %v703, 96
        %v707 = vpop.permute.xlu0 %706
        %vm708 = vcmask 64512
        %v710 = vsel %vm708, %v702, 0
        %v712 = vsel %vm708, %v707, 0
        %714 = vmatprep.subr.mxu0 0.0
        %715 = vmatpush1.xpose.msra.mxu0 0.0
        %716 = vmatprep.subr.mxu0 0.0
        %717 = vmatpush1.xpose.msra.mxu0 0.0
        %718 = vmatprep.subr.mxu0 0.0
        %719 = vmatpush1.xpose.msra.mxu0 0.0
        %720 = vmatprep.subr.mxu0 0.0
        %721 = vmatpush1.xpose.msra.mxu0 0.0
        %722 = vmatprep.subr.mxu0 0.0
        %723 = vmatpush1.xpose.msra.mxu0 0.0
        %724 = vmatprep.subr.mxu0 0.0
        %725 = vmatpush1.xpose.msra.mxu0 0.0
        %726 = vmatprep.subr.mxu0 0.0
        %727 = vmatpush1.xpose.msra.mxu0 0.0
        %728 = vmatprep.subr.mxu0 0.0
        %729 = vmatpush1.xpose.msra.mxu0 0.0
        %730 = vmatprep.subr.mxu0 0.0
        %731 = vmatpush1.xpose.msra.mxu0 0.0
        %732 = vmatprep.subr.mxu0 0.0
        %733 = vmatpush1.xpose.msra.mxu0 0.0
        %734 = vmatprep.subr.mxu0 0.0
        %735 = vmatpush1.xpose.msra.mxu0 0.0
        %736 = vmatprep.subr.mxu0 0.0
        %737 = vmatpush1.xpose.msra.mxu0 0.0
        %738 = vmatprep.subr.mxu0 0.0
        %739 = vmatpush1.xpose.msra.mxu0 0.0
        %740 = vmatprep.subr.mxu0 0.0
        %741 = vmatpush1.xpose.msra.mxu0 0.0
        %742 = vmatprep.subr.mxu0 0.0
        %743 = vmatpush1.xpose.msra.mxu0 0.0
        %744 = vmatprep.subr.mxu0 0.0
        %745 = vmatpush1.xpose.msra.mxu0 %v712
        %746 = vmatprep.subr.mxu0 0.0
        %747 = vmatpush2.xpose.msra.mxu0 0.0
        %748 = vmatprep.subr.mxu0 0.0
        %749 = vmatpush2.xpose.msra.mxu0 0.0
        %750 = vmatprep.subr.mxu0 0.0
        %751 = vmatpush2.xpose.msra.mxu0 0.0
        %752 = vmatprep.subr.mxu0 0.0
        %753 = vmatpush2.xpose.msra.mxu0 0.0
        %754 = vmatprep.subr.mxu0 0.0
        %755 = vmatpush2.xpose.msra.mxu0 0.0
        %756 = vmatprep.subr.mxu0 0.0
        %757 = vmatpush2.xpose.msra.mxu0 0.0
        %758 = vmatprep.subr.mxu0 0.0
        %759 = vmatpush2.xpose.msra.mxu0 0.0
        %760 = vmatprep.subr.mxu0 0.0
        %761 = vmatpush2.xpose.msra.mxu0 0.0
        %762 = vmatprep.subr.mxu0 0.0
        %763 = vmatpush2.xpose.msra.mxu0 0.0
        %764 = vmatprep.subr.mxu0 0.0
        %765 = vmatpush2.xpose.msra.mxu0 0.0
        %766 = vmatprep.subr.mxu0 0.0
        %767 = vmatpush2.xpose.msra.mxu0 0.0
        %768 = vmatprep.subr.mxu0 0.0
        %769 = vmatpush2.xpose.msra.mxu0 0.0
        %770 = vmatprep.subr.mxu0 0.0
        %771 = vmatpush2.xpose.msra.mxu0 0.0
        %772 = vmatprep.subr.mxu0 0.0
        %773 = vmatpush2.xpose.msra.mxu0 0.0
        %774 = vmatprep.subr.mxu0 0.0
        %775 = vmatpush2.xpose.msra.mxu0 0.0
        %776 = vmatprep.subr.mxu0 0.0
        %777 = vmatpush2.xpose.msra.mxu0 0.0
        %778 = vmatprep.mubr.f32.mxu0 0.0
        %779 = vmatmul.mubr.f32.gmra.mxu0 %v710
        %v780 = vpop.f32.mrf.mxu0
        %v781 = vadd.f32 %v699, %v780
        %v782 = vpop.f32.mrf.mxu0
        %783 = vdwg.mxu0
        %v784 = vsel %vm708, %v781, -inf
        %785 = vmax.xlane.f32.xlu0 %v784
        %v786 = vpop.xlane.xlu0 %785
        %v787 = vsub.f32 %v781, %v786
        %v788 = vmul.f32 %v787, 1.442695
        %v789 = vpow.pop %v788
        %v790 = vsel %vm708, %v789, 0.0
        %791 = vadd.xlane.f32.xlu0 %v790
        %v792 = vpop.xlane.xlu0 %791
        %v793 = vrcp.pop %v792
        %v794 = vmul.f32 %v789, %v793
        %795 = vst.msk [vmem:[%s519] sm:$0xff] %vm708, %v794
        %v797 = vsel %vm708, %v794, 0
        %799 = vmatprep.subr.mxu0 0.0
        %800 = vmatpush1.msra.mxu0 0.0
        %801 = vmatprep.subr.mxu0 0.0
        %802 = vmatpush1.msra.mxu0 0.0
        %803 = vmatprep.subr.mxu0 0.0
        %804 = vmatpush1.msra.mxu0 0.0
        %805 = vmatprep.subr.mxu0 0.0
        %806 = vmatpush1.msra.mxu0 0.0
        %807 = vmatprep.subr.mxu0 0.0
        %808 = vmatpush1.msra.mxu0 0.0
        %809 = vmatprep.subr.mxu0 0.0
        %810 = vmatpush1.msra.mxu0 0.0
        %811 = vmatprep.subr.mxu0 0.0
        %812 = vmatpush1.msra.mxu0 0.0
        %813 = vmatprep.subr.mxu0 0.0
        %814 = vmatpush1.msra.mxu0 0.0
        %815 = vmatprep.subr.mxu0 0.0
        %816 = vmatpush1.msra.mxu0 0.0
        %817 = vmatprep.subr.mxu0 0.0
        %818 = vmatpush1.msra.mxu0 0.0
        %819 = vmatprep.subr.mxu0 0.0
        %820 = vmatpush1.msra.mxu0 0.0
        %821 = vmatprep.subr.mxu0 0.0
        %822 = vmatpush1.msra.mxu0 0.0
        %823 = vmatprep.subr.mxu0 0.0
        %824 = vmatpush1.msra.mxu0 0.0
        %825 = vmatprep.subr.mxu0 0.0
        %826 = vmatpush1.msra.mxu0 0.0
        %827 = vmatprep.subr.mxu0 0.0
        %828 = vmatpush1.msra.mxu0 0.0
        %829 = vmatprep.subr.mxu0 0.0
        %830 = vmatpush1.msra.mxu0 %v704
        %831 = vmatprep.subr.mxu0 0.0
        %832 = vmatpush2.msra.mxu0 0.0
        %833 = vmatprep.subr.mxu0 0.0
        %834 = vmatpush2.msra.mxu0 0.0
        %835 = vmatprep.subr.mxu0 0.0
        %836 = vmatpush2.msra.mxu0 0.0
        %837 = vmatprep.subr.mxu0 0.0
        %838 = vmatpush2.msra.mxu0 0.0
        %839 = vmatprep.subr.mxu0 0.0
        %840 = vmatpush2.msra.mxu0 0.0
        %841 = vmatprep.subr.mxu0 0.0
        %842 = vmatpush2.msra.mxu0 0.0
        %843 = vmatprep.subr.mxu0 0.0
        %844 = vmatpush2.msra.mxu0 0.0
        %845 = vmatprep.subr.mxu0 0.0
        %846 = vmatpush2.msra.mxu0 0.0
        %847 = vmatprep.subr.mxu0 0.0
        %848 = vmatpush2.msra.mxu0 0.0
        %849 = vmatprep.subr.mxu0 0.0
        %850 = vmatpush2.msra.mxu0 0.0
        %851 = vmatprep.subr.mxu0 0.0
        %852 = vmatpush2.msra.mxu0 0.0
        %853 = vmatprep.subr.mxu0 0.0
        %854 = vmatpush2.msra.mxu0 0.0
        %855 = vmatprep.subr.mxu0 0.0
        %856 = vmatpush2.msra.mxu0 0.0
        %857 = vmatprep.subr.mxu0 0.0
        %858 = vmatpush2.msra.mxu0 0.0
        %859 = vmatprep.subr.mxu0 0.0
        %860 = vmatpush2.msra.mxu0 0.0
        %861 = vmatprep.subr.mxu0 0.0
        %862 = vmatpush2.msra.mxu0 0.0
        %863 = vmatprep.mubr.f32.mxu0 0.0
        %864 = vmatmul.mubr.f32.gmra.mxu0 %v797
        %v865 = vpop.f32.mrf.mxu0
        %v866 = vadd.f32 0.0, %v865
        %v867 = vpop.f32.mrf.mxu0
        %868 = vdwg.mxu0
        %869 = vst.msk [vmem:[#allocation4] sm:$0xff] %vm708, %v866
        %v870 = vld [vmem:[%s701] sm:$0xff]
        %v871 = vld [vmem:[#allocation2] sm:$0xff]
        %v872 = vld [vmem:[#allocation3] sm:$0xff]
        %874 = vrot.lane.b32.xlu0 %v870, 120
        %v875 = vpop.permute.xlu0 %874
        %877 = vrot.lane.b32.xlu0 %v871, 88
        %v878 = vpop.permute.xlu0 %877
        %v879 = vsel %vm708, %v875, 0
        %v881 = vsel %vm708, %v878, 0
        %883 = vmatprep.subr.mxu0 0.0
        %884 = vmatpush1.xpose.msra.mxu0 0.0
        %885 = vmatprep.subr.mxu0 0.0
        %886 = vmatpush1.xpose.msra.mxu0 0.0
        %887 = vmatprep.subr.mxu0 0.0
        %888 = vmatpush1.xpose.msra.mxu0 0.0
        %889 = vmatprep.subr.mxu0 0.0
        %890 = vmatpush1.xpose.msra.mxu0 0.0
        %891 = vmatprep.subr.mxu0 0.0
        %892 = vmatpush1.xpose.msra.mxu0 0.0
        %893 = vmatprep.subr.mxu0 0.0
        %894 = vmatpush1.xpose.msra.mxu0 0.0
        %895 = vmatprep.subr.mxu0 0.0
        %896 = vmatpush1.xpose.msra.mxu0 0.0
        %897 = vmatprep.subr.mxu0 0.0
        %898 = vmatpush1.xpose.msra.mxu0 0.0
        %899 = vmatprep.subr.mxu0 0.0
        %900 = vmatpush1.xpose.msra.mxu0 0.0
        %901 = vmatprep.subr.mxu0 0.0
        %902 = vmatpush1.xpose.msra.mxu0 0.0
        %903 = vmatprep.subr.mxu0 0.0
        %904 = vmatpush1.xpose.msra.mxu0 0.0
        %905 = vmatprep.subr.mxu0 0.0
        %906 = vmatpush1.xpose.msra.mxu0 0.0
        %907 = vmatprep.subr.mxu0 0.0
        %908 = vmatpush1.xpose.msra.mxu0 0.0
        %909 = vmatprep.subr.mxu0 0.0
        %910 = vmatpush1.xpose.msra.mxu0 0.0
        %911 = vmatprep.subr.mxu0 0.0
        %912 = vmatpush1.xpose.msra.mxu0 0.0
        %913 = vmatprep.subr.mxu0 0.0
        %914 = vmatpush1.xpose.msra.mxu0 %v881
        %915 = vmatprep.subr.mxu0 0.0
        %916 = vmatpush2.xpose.msra.mxu0 0.0
        %917 = vmatprep.subr.mxu0 0.0
        %918 = vmatpush2.xpose.msra.mxu0 0.0
        %919 = vmatprep.subr.mxu0 0.0
        %920 = vmatpush2.xpose.msra.mxu0 0.0
        %921 = vmatprep.subr.mxu0 0.0
        %922 = vmatpush2.xpose.msra.mxu0 0.0
        %923 = vmatprep.subr.mxu0 0.0
        %924 = vmatpush2.xpose.msra.mxu0 0.0
        %925 = vmatprep.subr.mxu0 0.0
        %926 = vmatpush2.xpose.msra.mxu0 0.0
        %927 = vmatprep.subr.mxu0 0.0
        %928 = vmatpush2.xpose.msra.mxu0 0.0
        %929 = vmatprep.subr.mxu0 0.0
        %930 = vmatpush2.xpose.msra.mxu0 0.0
        %931 = vmatprep.subr.mxu0 0.0
        %932 = vmatpush2.xpose.msra.mxu0 0.0
        %933 = vmatprep.subr.mxu0 0.0
        %934 = vmatpush2.xpose.msra.mxu0 0.0
        %935 = vmatprep.subr.mxu0 0.0
        %936 = vmatpush2.xpose.msra.mxu0 0.0
        %937 = vmatprep.subr.mxu0 0.0
        %938 = vmatpush2.xpose.msra.mxu0 0.0
        %939 = vmatprep.subr.mxu0 0.0
        %940 = vmatpush2.xpose.msra.mxu0 0.0
        %941 = vmatprep.subr.mxu0 0.0
        %942 = vmatpush2.xpose.msra.mxu0 0.0
        %943 = vmatprep.subr.mxu0 0.0
        %944 = vmatpush2.xpose.msra.mxu0 0.0
        %945 = vmatprep.subr.mxu0 0.0
        %946 = vmatpush2.xpose.msra.mxu0 0.0
        %947 = vmatprep.mubr.f32.mxu0 0.0
        %948 = vmatmul.mubr.f32.gmra.mxu0 %v879
        %v949 = vpop.f32.mrf.mxu0
        %v950 = vadd.f32 %v699, %v949
        %v951 = vpop.f32.mrf.mxu0
        %952 = vdwg.mxu0
        %v953 = vsel %vm708, %v950, -inf
        %954 = vmax.xlane.f32.xlu0 %v953
        %v955 = vpop.xlane.xlu0 %954
        %v956 = vsub.f32 %v950, %v955
        %v957 = vmul.f32 %v956, 1.442695
        %v958 = vpow.pop %v957
        %v959 = vsel %vm708, %v958, 0.0
        %960 = vadd.xlane.f32.xlu0 %v959
        %v961 = vpop.xlane.xlu0 %960
        %v962 = vrcp.pop %v961
        %v963 = vmul.f32 %v958, %v962
        %s964 = scalar_lea.vmem %s519, 8 [#allocation17]
        %965 = vst.msk [vmem:[%s964] sm:$0xff] %vm708, %v963
        %967 = vrot.lane.b32.xlu0 %v872, 120
        %v968 = vpop.permute.xlu0 %967
        %v971 = vsel %vm708, %v963, 0
        %973 = vmatprep.subr.mxu0 0.0
        %974 = vmatpush1.msra.mxu0 0.0
        %975 = vmatprep.subr.mxu0 0.0
        %976 = vmatpush1.msra.mxu0 0.0
        %977 = vmatprep.subr.mxu0 0.0
        %978 = vmatpush1.msra.mxu0 0.0
        %979 = vmatprep.subr.mxu0 0.0
        %980 = vmatpush1.msra.mxu0 0.0
        %981 = vmatprep.subr.mxu0 0.0
        %982 = vmatpush1.msra.mxu0 0.0
        %983 = vmatprep.subr.mxu0 0.0
        %984 = vmatpush1.msra.mxu0 0.0
        %985 = vmatprep.subr.mxu0 0.0
        %986 = vmatpush1.msra.mxu0 0.0
        %987 = vmatprep.subr.mxu0 0.0
        %988 = vmatpush1.msra.mxu0 0.0
        %989 = vmatprep.subr.mxu0 0.0
        %990 = vmatpush1.msra.mxu0 0.0
        %991 = vmatprep.subr.mxu0 0.0
        %992 = vmatpush1.msra.mxu0 0.0
        %993 = vmatprep.subr.mxu0 0.0
        %994 = vmatpush1.msra.mxu0 0.0
        %995 = vmatprep.subr.mxu0 0.0
        %996 = vmatpush1.msra.mxu0 0.0
        %997 = vmatprep.subr.mxu0 0.0
        %998 = vmatpush1.msra.mxu0 0.0
        %999 = vmatprep.subr.mxu0 0.0
        %1000 = vmatpush1.msra.mxu0 0.0
        %1001 = vmatprep.subr.mxu0 0.0
        %1002 = vmatpush1.msra.mxu0 0.0
        %1003 = vmatprep.subr.mxu0 0.0
        %1004 = vmatpush1.msra.mxu0 %v968
        %1005 = vmatprep.subr.mxu0 0.0
        %1006 = vmatpush2.msra.mxu0 0.0
        %1007 = vmatprep.subr.mxu0 0.0
        %1008 = vmatpush2.msra.mxu0 0.0
        %1009 = vmatprep.subr.mxu0 0.0
        %1010 = vmatpush2.msra.mxu0 0.0
        %1011 = vmatprep.subr.mxu0 0.0
        %1012 = vmatpush2.msra.mxu0 0.0
        %1013 = vmatprep.subr.mxu0 0.0
        %1014 = vmatpush2.msra.mxu0 0.0
        %1015 = vmatprep.subr.mxu0 0.0
        %1016 = vmatpush2.msra.mxu0 0.0
        %1017 = vmatprep.subr.mxu0 0.0
        %1018 = vmatpush2.msra.mxu0 0.0
        %1019 = vmatprep.subr.mxu0 0.0
        %1020 = vmatpush2.msra.mxu0 0.0
        %1021 = vmatprep.subr.mxu0 0.0
        %1022 = vmatpush2.msra.mxu0 0.0
        %1023 = vmatprep.subr.mxu0 0.0
        %1024 = vmatpush2.msra.mxu0 0.0
        %1025 = vmatprep.subr.mxu0 0.0
        %1026 = vmatpush2.msra.mxu0 0.0
        %1027 = vmatprep.subr.mxu0 0.0
        %1028 = vmatpush2.msra.mxu0 0.0
        %1029 = vmatprep.subr.mxu0 0.0
        %1030 = vmatpush2.msra.mxu0 0.0
        %1031 = vmatprep.subr.mxu0 0.0
        %1032 = vmatpush2.msra.mxu0 0.0
        %1033 = vmatprep.subr.mxu0 0.0
        %1034 = vmatpush2.msra.mxu0 0.0
        %1035 = vmatprep.subr.mxu0 0.0
        %1036 = vmatpush2.msra.mxu0 0.0
        %1037 = vmatprep.mubr.f32.mxu0 0.0
        %1038 = vmatmul.mubr.f32.gmra.mxu0 %v971
        %v1039 = vpop.f32.mrf.mxu0
        %v1040 = vadd.f32 0.0, %v1039
        %v1041 = vpop.f32.mrf.mxu0
        %1042 = vdwg.mxu0
        %1044 = vrot.lane.b32.xlu0 %v1040, 8
        %v1045 = vpop.permute.xlu0 %1044
        %vm1047 = vcmask 130112
        %1048 = vst.msk [vmem:[#allocation4] sm:$0xff] %vm1047, %v1045
        %v1049 = vld [vmem:[%s701] sm:$0xff]
        %v1050 = vld [vmem:[#allocation2] sm:$0xff]
        %v1051 = vld [vmem:[#allocation3] sm:$0xff]
        %1053 = vrot.lane.b32.xlu0 %v1049, 112
        %v1054 = vpop.permute.xlu0 %1053
        %1056 = vrot.lane.b32.xlu0 %v1050, 80
        %v1057 = vpop.permute.xlu0 %1056
        %v1058 = vsel %vm708, %v1054, 0
        %v1060 = vsel %vm708, %v1057, 0
        %1062 = vmatprep.subr.mxu0 0.0
        %1063 = vmatpush1.xpose.msra.mxu0 0.0
        %1064 = vmatprep.subr.mxu0 0.0
        %1065 = vmatpush1.xpose.msra.mxu0 0.0
        %1066 = vmatprep.subr.mxu0 0.0
        %1067 = vmatpush1.xpose.msra.mxu0 0.0
        %1068 = vmatprep.subr.mxu0 0.0
        %1069 = vmatpush1.xpose.msra.mxu0 0.0
        %1070 = vmatprep.subr.mxu0 0.0
        %1071 = vmatpush1.xpose.msra.mxu0 0.0
        %1072 = vmatprep.subr.mxu0 0.0
        %1073 = vmatpush1.xpose.msra.mxu0 0.0
        %1074 = vmatprep.subr.mxu0 0.0
        %1075 = vmatpush1.xpose.msra.mxu0 0.0
        %1076 = vmatprep.subr.mxu0 0.0
        %1077 = vmatpush1.xpose.msra.mxu0 0.0
        %1078 = vmatprep.subr.mxu0 0.0
        %1079 = vmatpush1.xpose.msra.mxu0 0.0
        %1080 = vmatprep.subr.mxu0 0.0
        %1081 = vmatpush1.xpose.msra.mxu0 0.0
        %1082 = vmatprep.subr.mxu0 0.0
        %1083 = vmatpush1.xpose.msra.mxu0 0.0
        %1084 = vmatprep.subr.mxu0 0.0
        %1085 = vmatpush1.xpose.msra.mxu0 0.0
        %1086 = vmatprep.subr.mxu0 0.0
        %1087 = vmatpush1.xpose.msra.mxu0 0.0
        %1088 = vmatprep.subr.mxu0 0.0
        %1089 = vmatpush1.xpose.msra.mxu0 0.0
        %1090 = vmatprep.subr.mxu0 0.0
        %1091 = vmatpush1.xpose.msra.mxu0 0.0
        %1092 = vmatprep.subr.mxu0 0.0
        %1093 = vmatpush1.xpose.msra.mxu0 %v1060
        %1094 = vmatprep.subr.mxu0 0.0
        %1095 = vmatpush2.xpose.msra.mxu0 0.0
        %1096 = vmatprep.subr.mxu0 0.0
        %1097 = vmatpush2.xpose.msra.mxu0 0.0
        %1098 = vmatprep.subr.mxu0 0.0
        %1099 = vmatpush2.xpose.msra.mxu0 0.0
        %1100 = vmatprep.subr.mxu0 0.0
        %1101 = vmatpush2.xpose.msra.mxu0 0.0
        %1102 = vmatprep.subr.mxu0 0.0
        %1103 = vmatpush2.xpose.msra.mxu0 0.0
        %1104 = vmatprep.subr.mxu0 0.0
        %1105 = vmatpush2.xpose.msra.mxu0 0.0
        %1106 = vmatprep.subr.mxu0 0.0
        %1107 = vmatpush2.xpose.msra.mxu0 0.0
        %1108 = vmatprep.subr.mxu0 0.0
        %1109 = vmatpush2.xpose.msra.mxu0 0.0
        %1110 = vmatprep.subr.mxu0 0.0
        %1111 = vmatpush2.xpose.msra.mxu0 0.0
        %1112 = vmatprep.subr.mxu0 0.0
        %1113 = vmatpush2.xpose.msra.mxu0 0.0
        %1114 = vmatprep.subr.mxu0 0.0
        %1115 = vmatpush2.xpose.msra.mxu0 0.0
        %1116 = vmatprep.subr.mxu0 0.0
        %1117 = vmatpush2.xpose.msra.mxu0 0.0
        %1118 = vmatprep.subr.mxu0 0.0
        %1119 = vmatpush2.xpose.msra.mxu0 0.0
        %1120 = vmatprep.subr.mxu0 0.0
        %1121 = vmatpush2.xpose.msra.mxu0 0.0
        %1122 = vmatprep.subr.mxu0 0.0
        %1123 = vmatpush2.xpose.msra.mxu0 0.0
        %1124 = vmatprep.subr.mxu0 0.0
        %1125 = vmatpush2.xpose.msra.mxu0 0.0
        %1126 = vmatprep.mubr.f32.mxu0 0.0
        %1127 = vmatmul.mubr.f32.gmra.mxu0 %v1058
        %v1128 = vpop.f32.mrf.mxu0
        %v1129 = vadd.f32 %v699, %v1128
        %v1130 = vpop.f32.mrf.mxu0
        %1131 = vdwg.mxu0
        %v1132 = vsel %vm708, %v1129, -inf
        %1133 = vmax.xlane.f32.xlu0 %v1132
        %v1134 = vpop.xlane.xlu0 %1133
        %v1135 = vsub.f32 %v1129, %v1134
        %v1136 = vmul.f32 %v1135, 1.442695
        %v1137 = vpow.pop %v1136
        %v1138 = vsel %vm708, %v1137, 0.0
        %1139 = vadd.xlane.f32.xlu0 %v1138
        %v1140 = vpop.xlane.xlu0 %1139
        %v1141 = vrcp.pop %v1140
        %v1142 = vmul.f32 %v1137, %v1141
        %s1143 = scalar_lea.vmem %s519, 16 [#allocation17]
        %1144 = vst.msk [vmem:[%s1143] sm:$0xff] %vm708, %v1142
        %1146 = vrot.lane.b32.xlu0 %v1051, 112
        %v1147 = vpop.permute.xlu0 %1146
        %v1150 = vsel %vm708, %v1142, 0
        %1152 = vmatprep.subr.mxu0 0.0
        %1153 = vmatpush1.msra.mxu0 0.0
        %1154 = vmatprep.subr.mxu0 0.0
        %1155 = vmatpush1.msra.mxu0 0.0
        %1156 = vmatprep.subr.mxu0 0.0
        %1157 = vmatpush1.msra.mxu0 0.0
        %1158 = vmatprep.subr.mxu0 0.0
        %1159 = vmatpush1.msra.mxu0 0.0
        %1160 = vmatprep.subr.mxu0 0.0
        %1161 = vmatpush1.msra.mxu0 0.0
        %1162 = vmatprep.subr.mxu0 0.0
        %1163 = vmatpush1.msra.mxu0 0.0
        %1164 = vmatprep.subr.mxu0 0.0
        %1165 = vmatpush1.msra.mxu0 0.0
        %1166 = vmatprep.subr.mxu0 0.0
        %1167 = vmatpush1.msra.mxu0 0.0
        %1168 = vmatprep.subr.mxu0 0.0
        %1169 = vmatpush1.msra.mxu0 0.0
        %1170 = vmatprep.subr.mxu0 0.0
        %1171 = vmatpush1.msra.mxu0 0.0
        %1172 = vmatprep.subr.mxu0 0.0
        %1173 = vmatpush1.msra.mxu0 0.0
        %1174 = vmatprep.subr.mxu0 0.0
        %1175 = vmatpush1.msra.mxu0 0.0
        %1176 = vmatprep.subr.mxu0 0.0
        %1177 = vmatpush1.msra.mxu0 0.0
        %1178 = vmatprep.subr.mxu0 0.0
        %1179 = vmatpush1.msra.mxu0 0.0
        %1180 = vmatprep.subr.mxu0 0.0
        %1181 = vmatpush1.msra.mxu0 0.0
        %1182 = vmatprep.subr.mxu0 0.0
        %1183 = vmatpush1.msra.mxu0 %v1147
        %1184 = vmatprep.subr.mxu0 0.0
        %1185 = vmatpush2.msra.mxu0 0.0
        %1186 = vmatprep.subr.mxu0 0.0
        %1187 = vmatpush2.msra.mxu0 0.0
        %1188 = vmatprep.subr.mxu0 0.0
        %1189 = vmatpush2.msra.mxu0 0.0
        %1190 = vmatprep.subr.mxu0 0.0
        %1191 = vmatpush2.msra.mxu0 0.0
        %1192 = vmatprep.subr.mxu0 0.0
        %1193 = vmatpush2.msra.mxu0 0.0
        %1194 = vmatprep.subr.mxu0 0.0
        %1195 = vmatpush2.msra.mxu0 0.0
        %1196 = vmatprep.subr.mxu0 0.0
        %1197 = vmatpush2.msra.mxu0 0.0
        %1198 = vmatprep.subr.mxu0 0.0
        %1199 = vmatpush2.msra.mxu0 0.0
        %1200 = vmatprep.subr.mxu0 0.0
        %1201 = vmatpush2.msra.mxu0 0.0
        %1202 = vmatprep.subr.mxu0 0.0
        %1203 = vmatpush2.msra.mxu0 0.0
        %1204 = vmatprep.subr.mxu0 0.0
        %1205 = vmatpush2.msra.mxu0 0.0
        %1206 = vmatprep.subr.mxu0 0.0
        %1207 = vmatpush2.msra.mxu0 0.0
        %1208 = vmatprep.subr.mxu0 0.0
        %1209 = vmatpush2.msra.mxu0 0.0
        %1210 = vmatprep.subr.mxu0 0.0
        %1211 = vmatpush2.msra.mxu0 0.0
        %1212 = vmatprep.subr.mxu0 0.0
        %1213 = vmatpush2.msra.mxu0 0.0
        %1214 = vmatprep.subr.mxu0 0.0
        %1215 = vmatpush2.msra.mxu0 0.0
        %1216 = vmatprep.mubr.f32.mxu0 0.0
        %1217 = vmatmul.mubr.f32.gmra.mxu0 %v1150
        %v1218 = vpop.f32.mrf.mxu0
        %v1219 = vadd.f32 0.0, %v1218
        %v1220 = vpop.f32.mrf.mxu0
        %1221 = vdwg.mxu0
        %1223 = vrot.lane.b32.xlu0 %v1219, 16
        %v1224 = vpop.permute.xlu0 %1223
        %vm1226 = vcmask 195712
        %1227 = vst.msk [vmem:[#allocation4] sm:$0xff] %vm1226, %v1224
        %v1228 = vld [vmem:[%s701] sm:$0xff]
        %v1229 = vld [vmem:[#allocation2] sm:$0xff]
        %v1230 = vld [vmem:[#allocation3] sm:$0xff]
        %1232 = vrot.lane.b32.xlu0 %v1228, 104
        %v1233 = vpop.permute.xlu0 %1232
        %1235 = vrot.lane.b32.xlu0 %v1229, 72
        %v1236 = vpop.permute.xlu0 %1235
        %v1237 = vsel %vm708, %v1233, 0
        %v1239 = vsel %vm708, %v1236, 0
        %1241 = vmatprep.subr.mxu0 0.0
        %1242 = vmatpush1.xpose.msra.mxu0 0.0
        %1243 = vmatprep.subr.mxu0 0.0
        %1244 = vmatpush1.xpose.msra.mxu0 0.0
        %1245 = vmatprep.subr.mxu0 0.0
        %1246 = vmatpush1.xpose.msra.mxu0 0.0
        %1247 = vmatprep.subr.mxu0 0.0
        %1248 = vmatpush1.xpose.msra.mxu0 0.0
        %1249 = vmatprep.subr.mxu0 0.0
        %1250 = vmatpush1.xpose.msra.mxu0 0.0
        %1251 = vmatprep.subr.mxu0 0.0
        %1252 = vmatpush1.xpose.msra.mxu0 0.0
        %1253 = vmatprep.subr.mxu0 0.0
        %1254 = vmatpush1.xpose.msra.mxu0 0.0
        %1255 = vmatprep.subr.mxu0 0.0
        %1256 = vmatpush1.xpose.msra.mxu0 0.0
        %1257 = vmatprep.subr.mxu0 0.0
        %1258 = vmatpush1.xpose.msra.mxu0 0.0
        %1259 = vmatprep.subr.mxu0 0.0
        %1260 = vmatpush1.xpose.msra.mxu0 0.0
        %1261 = vmatprep.subr.mxu0 0.0
        %1262 = vmatpush1.xpose.msra.mxu0 0.0
        %1263 = vmatprep.subr.mxu0 0.0
        %1264 = vmatpush1.xpose.msra.mxu0 0.0
        %1265 = vmatprep.subr.mxu0 0.0
        %1266 = vmatpush1.xpose.msra.mxu0 0.0
        %1267 = vmatprep.subr.mxu0 0.0
        %1268 = vmatpush1.xpose.msra.mxu0 0.0
        %1269 = vmatprep.subr.mxu0 0.0
        %1270 = vmatpush1.xpose.msra.mxu0 0.0
        %1271 = vmatprep.subr.mxu0 0.0
        %1272 = vmatpush1.xpose.msra.mxu0 %v1239
        %1273 = vmatprep.subr.mxu0 0.0
        %1274 = vmatpush2.xpose.msra.mxu0 0.0
        %1275 = vmatprep.subr.mxu0 0.0
        %1276 = vmatpush2.xpose.msra.mxu0 0.0
        %1277 = vmatprep.subr.mxu0 0.0
        %1278 = vmatpush2.xpose.msra.mxu0 0.0
        %1279 = vmatprep.subr.mxu0 0.0
        %1280 = vmatpush2.xpose.msra.mxu0 0.0
        %1281 = vmatprep.subr.mxu0 0.0
        %1282 = vmatpush2.xpose.msra.mxu0 0.0
        %1283 = vmatprep.subr.mxu0 0.0
        %1284 = vmatpush2.xpose.msra.mxu0 0.0
        %1285 = vmatprep.subr.mxu0 0.0
        %1286 = vmatpush2.xpose.msra.mxu0 0.0
        %1287 = vmatprep.subr.mxu0 0.0
        %1288 = vmatpush2.xpose.msra.mxu0 0.0
        %1289 = vmatprep.subr.mxu0 0.0
        %1290 = vmatpush2.xpose.msra.mxu0 0.0
        %1291 = vmatprep.subr.mxu0 0.0
        %1292 = vmatpush2.xpose.msra.mxu0 0.0
        %1293 = vmatprep.subr.mxu0 0.0
        %1294 = vmatpush2.xpose.msra.mxu0 0.0
        %1295 = vmatprep.subr.mxu0 0.0
        %1296 = vmatpush2.xpose.msra.mxu0 0.0
        %1297 = vmatprep.subr.mxu0 0.0
        %1298 = vmatpush2.xpose.msra.mxu0 0.0
        %1299 = vmatprep.subr.mxu0 0.0
        %1300 = vmatpush2.xpose.msra.mxu0 0.0
        %1301 = vmatprep.subr.mxu0 0.0
        %1302 = vmatpush2.xpose.msra.mxu0 0.0
        %1303 = vmatprep.subr.mxu0 0.0
        %1304 = vmatpush2.xpose.msra.mxu0 0.0
        %1305 = vmatprep.mubr.f32.mxu0 0.0
        %1306 = vmatmul.mubr.f32.gmra.mxu0 %v1237
        %v1307 = vpop.f32.mrf.mxu0
        %v1308 = vadd.f32 %v699, %v1307
        %v1309 = vpop.f32.mrf.mxu0
        %1310 = vdwg.mxu0
        %v1311 = vsel %vm708, %v1308, -inf
        %1312 = vmax.xlane.f32.xlu0 %v1311
        %v1313 = vpop.xlane.xlu0 %1312
        %v1314 = vsub.f32 %v1308, %v1313
        %v1315 = vmul.f32 %v1314, 1.442695
        %v1316 = vpow.pop %v1315
        %v1317 = vsel %vm708, %v1316, 0.0
        %1318 = vadd.xlane.f32.xlu0 %v1317
        %v1319 = vpop.xlane.xlu0 %1318
        %v1320 = vrcp.pop %v1319
        %v1321 = vmul.f32 %v1316, %v1320
        %s1322 = scalar_lea.vmem %s519, 24 [#allocation17]
        %1323 = vst.msk [vmem:[%s1322] sm:$0xff] %vm708, %v1321
        %1325 = vrot.lane.b32.xlu0 %v1230, 104
        %v1326 = vpop.permute.xlu0 %1325
        %v1329 = vsel %vm708, %v1321, 0
        %1331 = vmatprep.subr.mxu0 0.0
        %1332 = vmatpush1.msra.mxu0 0.0
        %1333 = vmatprep.subr.mxu0 0.0
        %1334 = vmatpush1.msra.mxu0 0.0
        %1335 = vmatprep.subr.mxu0 0.0
        %1336 = vmatpush1.msra.mxu0 0.0
        %1337 = vmatprep.subr.mxu0 0.0
        %1338 = vmatpush1.msra.mxu0 0.0
        %1339 = vmatprep.subr.mxu0 0.0
        %1340 = vmatpush1.msra.mxu0 0.0
        %1341 = vmatprep.subr.mxu0 0.0
        %1342 = vmatpush1.msra.mxu0 0.0
        %1343 = vmatprep.subr.mxu0 0.0
        %1344 = vmatpush1.msra.mxu0 0.0
        %1345 = vmatprep.subr.mxu0 0.0
        %1346 = vmatpush1.msra.mxu0 0.0
        %1347 = vmatprep.subr.mxu0 0.0
        %1348 = vmatpush1.msra.mxu0 0.0
        %1349 = vmatprep.subr.mxu0 0.0
        %1350 = vmatpush1.msra.mxu0 0.0
        %1351 = vmatprep.subr.mxu0 0.0
        %1352 = vmatpush1.msra.mxu0 0.0
        %1353 = vmatprep.subr.mxu0 0.0
        %1354 = vmatpush1.msra.mxu0 0.0
        %1355 = vmatprep.subr.mxu0 0.0
        %1356 = vmatpush1.msra.mxu0 0.0
        %1357 = vmatprep.subr.mxu0 0.0
        %1358 = vmatpush1.msra.mxu0 0.0
        %1359 = vmatprep.subr.mxu0 0.0
        %1360 = vmatpush1.msra.mxu0 0.0
        %1361 = vmatprep.subr.mxu0 0.0
        %1362 = vmatpush1.msra.mxu0 %v1326
        %1363 = vmatprep.subr.mxu0 0.0
        %1364 = vmatpush2.msra.mxu0 0.0
        %1365 = vmatprep.subr.mxu0 0.0
        %1366 = vmatpush2.msra.mxu0 0.0
        %1367 = vmatprep.subr.mxu0 0.0
        %1368 = vmatpush2.msra.mxu0 0.0
        %1369 = vmatprep.subr.mxu0 0.0
        %1370 = vmatpush2.msra.mxu0 0.0
        %1371 = vmatprep.subr.mxu0 0.0
        %1372 = vmatpush2.msra.mxu0 0.0
        %1373 = vmatprep.subr.mxu0 0.0
        %1374 = vmatpush2.msra.mxu0 0.0
        %1375 = vmatprep.subr.mxu0 0.0
        %1376 = vmatpush2.msra.mxu0 0.0
        %1377 = vmatprep.subr.mxu0 0.0
        %1378 = vmatpush2.msra.mxu0 0.0
        %1379 = vmatprep.subr.mxu0 0.0
        %1380 = vmatpush2.msra.mxu0 0.0
        %1381 = vmatprep.subr.mxu0 0.0
        %1382 = vmatpush2.msra.mxu0 0.0
        %1383 = vmatprep.subr.mxu0 0.0
        %1384 = vmatpush2.msra.mxu0 0.0
        %1385 = vmatprep.subr.mxu0 0.0
        %1386 = vmatpush2.msra.mxu0 0.0
        %1387 = vmatprep.subr.mxu0 0.0
        %1388 = vmatpush2.msra.mxu0 0.0
        %1389 = vmatprep.subr.mxu0 0.0
        %1390 = vmatpush2.msra.mxu0 0.0
        %1391 = vmatprep.subr.mxu0 0.0
        %1392 = vmatpush2.msra.mxu0 0.0
        %1393 = vmatprep.subr.mxu0 0.0
        %1394 = vmatpush2.msra.mxu0 0.0
        %1395 = vmatprep.mubr.f32.mxu0 0.0
        %1396 = vmatmul.mubr.f32.gmra.mxu0 %v1329
        %v1397 = vpop.f32.mrf.mxu0
        %v1398 = vadd.f32 0.0, %v1397
        %v1399 = vpop.f32.mrf.mxu0
        %1400 = vdwg.mxu0
        %1402 = vrot.lane.b32.xlu0 %v1398, 24
        %v1403 = vpop.permute.xlu0 %1402
        %vm1405 = vcmask 261312
        %1406 = vst.msk [vmem:[#allocation4] sm:$0xff] %vm1405, %v1403
        %v1407 = vld [vmem:[#allocation4] sm:$0xff]
        %v1408 = vld [vmem:[#allocation14] sm:$0xff]
        %v1409 = vld [vmem:[#allocation14 + $0x8] sm:$0xff]
        %v1410 = vld [vmem:[#allocation14 + $0x10] sm:$0xff]
        %v1411 = vld [vmem:[#allocation14 + $0x18] sm:$0xff]
        %v1412 = vld [vmem:[%s8] sm:$0x1]
        %v1414 = vlaneseq
        %v1415 = vshrl.u32 %v1414, 7
        %v1416 = vsub.s32 0, %v1415
        %v1417 = vrot.slane %v1412, %v1416
        %vm1419 = vcmask 261120
        %v1421 = vsel %vm1419, %v1407, 0
        %1423 = vmatprep.subr.mxu0 0.0
        %1424 = vmatpush1.msra.mxu0 0.0
        %1425 = vmatprep.subr.mxu0 0.0
        %1426 = vmatpush1.msra.mxu0 0.0
        %1427 = vmatprep.subr.mxu0 0.0
        %1428 = vmatpush1.msra.mxu0 0.0
        %1429 = vmatprep.subr.mxu0 0.0
        %1430 = vmatpush1.msra.mxu0 0.0
        %1431 = vmatprep.subr.mxu0 0.0
        %1432 = vmatpush1.msra.mxu0 0.0
        %1433 = vmatprep.subr.mxu0 0.0
        %1434 = vmatpush1.msra.mxu0 0.0
        %1435 = vmatprep.subr.mxu0 0.0
        %1436 = vmatpush1.msra.mxu0 0.0
        %1437 = vmatprep.subr.mxu0 0.0
        %1438 = vmatpush1.msra.mxu0 0.0
        %1439 = vmatprep.subr.mxu0 0.0
        %1440 = vmatpush1.msra.mxu0 0.0
        %1441 = vmatprep.subr.mxu0 0.0
        %1442 = vmatpush1.msra.mxu0 0.0
        %1443 = vmatprep.subr.mxu0 0.0
        %1444 = vmatpush1.msra.mxu0 0.0
        %1445 = vmatprep.subr.mxu0 0.0
        %1446 = vmatpush1.msra.mxu0 0.0
        %1447 = vmatprep.subr.mxu0 0.0
        %1448 = vmatpush1.msra.mxu0 %v1411
        %1449 = vmatprep.subr.mxu0 0.0
        %1450 = vmatpush1.msra.mxu0 %v1410
        %1451 = vmatprep.subr.mxu0 0.0
        %1452 = vmatpush1.msra.mxu0 %v1409
        %1453 = vmatprep.subr.mxu0 0.0
        %1454 = vmatpush1.msra.mxu0 %v1408
        %1455 = vmatprep.subr.mxu0 0.0
        %1456 = vmatpush2.msra.mxu0 0.0
        %1457 = vmatprep.subr.mxu0 0.0
        %1458 = vmatpush2.msra.mxu0 0.0
        %1459 = vmatprep.subr.mxu0 0.0
        %1460 = vmatpush2.msra.mxu0 0.0
        %1461 = vmatprep.subr.mxu0 0.0
        %1462 = vmatpush2.msra.mxu0 0.0
        %1463 = vmatprep.subr.mxu0 0.0
        %1464 = vmatpush2.msra.mxu0 0.0
        %1465 = vmatprep.subr.mxu0 0.0
        %1466 = vmatpush2.msra.mxu0 0.0
        %1467 = vmatprep.subr.mxu0 0.0
        %1468 = vmatpush2.msra.mxu0 0.0
        %1469 = vmatprep.subr.mxu0 0.0
        %1470 = vmatpush2.msra.mxu0 0.0
        %1471 = vmatprep.subr.mxu0 0.0
        %1472 = vmatpush2.msra.mxu0 0.0
        %1473 = vmatprep.subr.mxu0 0.0
        %1474 = vmatpush2.msra.mxu0 0.0
        %1475 = vmatprep.subr.mxu0 0.0
        %1476 = vmatpush2.msra.mxu0 0.0
        %1477 = vmatprep.subr.mxu0 0.0
        %1478 = vmatpush2.msra.mxu0 0.0
        %1479 = vmatprep.subr.mxu0 0.0
        %1480 = vmatpush2.msra.mxu0 0.0
        %1481 = vmatprep.subr.mxu0 0.0
        %1482 = vmatpush2.msra.mxu0 0.0
        %1483 = vmatprep.subr.mxu0 0.0
        %1484 = vmatpush2.msra.mxu0 0.0
        %1485 = vmatprep.subr.mxu0 0.0
        %1486 = vmatpush2.msra.mxu0 0.0
        %1487 = vmatprep.mubr.f32.mxu0 0.0
        %1488 = vmatmul.mubr.f32.gmra.mxu0 %v1421
        %v1489 = vpop.f32.mrf.mxu0
        %v1490 = vadd.f32 %v1417, %v1489
        %v1491 = vpop.f32.mrf.mxu0
        %1492 = vdwg.mxu0
        %1493 = vst.msk [vmem:[%s512] sm:$0xff] %vm1419, %v1490
        %s1494 = sand.u32 %s264, 1
        %s1495 = scalar_lea.sflag [#allocation7], %s1494
        %s1496 = sand.u32 %s264, 1
        %s1497 = smul.addr %s1496, 8
        %s1498 = scalar_lea.vmem [#allocation16], %s1497
        %s1499 = sand.u32 %s292, 1
        %s1500 = scalar_lea.sflag [#allocation18], %s1499
        %s1501 = sand.u32 %s292, 1
        %s1502 = smul.addr %s1501, 32
        %s1503 = scalar_lea.vmem [#allocation17], %s1502
        // Predicated region
        $region85: #{tpu_custom_call.1} parent=55 // pred_check
          %p1504 = pneg %p274
        $region86: #{tpu_custom_call.1} parent=55 // pred_check_branch
          %1506 = sbr.rel (%p1504) target = $region88
        $region87: #{tpu_custom_call.1} parent=55 // pred_region
          %s1508 = ssub.s32 128, 128
          %1509 = vsyncadd %s1495, %s1508
          %s1510 = sadd.s32 %s41, %s40
          %s1511 = smul.addr %s1510, 128
          %s1512 = scalar_lea.hbm %s9, %s1511
          %s1514 = sshll.u32 %s1498, 4
          %s1515 = int_to_ptr.vmem [resolvable:$true] %s1514
          %1517 = dma.vmem_to_hbm [thread:$0]  %s1515, 128, %s1512, %s1495
        $region88: #{tpu_custom_call.1} parent=55 // pred_fallthru
          _
        // Predicated region
        $region89: #{tpu_custom_call.1} parent=55 // pred_check
          %p1518 = pneg %p302
        $region90: #{tpu_custom_call.1} parent=55 // pred_check_branch
          %1520 = sbr.rel (%p1518) target = $region92
        $region91: #{tpu_custom_call.1} parent=55 // pred_region
          %s1522 = ssub.s32 512, 512
          %1523 = vsyncadd %s1500, %s1522
          %s1524 = smul.addr %s40, 4
          %s1525 = sadd.s32 %s41, %s1524
          %s1526 = smul.addr %s1525, 128
          %s1527 = scalar_lea.hbm %s10, %s1526
          %s1528 = sshll.u32 %s1503, 4
          %s1529 = int_to_ptr.vmem [resolvable:$true] %s1528
          %1534 = dma.vmem_to_hbm [thread:$0]  %s1529, 512, %s1527, %s1500, 128, 128, 8
        $region92: #{tpu_custom_call.1} parent=55 // pred_fallthru
          _
      $region56: #{tpu_custom_call.1} parent=5 // pred_fallthru
        _
      %p1535 = scmp.le.s32.totalorder 2, %s31
      // Predicated region
      $region93: #{tpu_custom_call.1} parent=5 // pred_check
        %p1536 = pneg %p1535
      $region94: #{tpu_custom_call.1} parent=5 // pred_check_branch
        %1538 = sbr.rel (%p1536) target = $region96
      $region95: #{tpu_custom_call.1} parent=5 // pred_region
        %s1539 = ssub.s32 %s31, 2
        // Predicated region
        $region97: #{tpu_custom_call.1} parent=95 // pred_check
          %p1540 = pneg %p280
        $region98: #{tpu_custom_call.1} parent=95 // pred_check_branch
          %1542 = sbr.rel (%p1540) target = $region100
        $region99: #{tpu_custom_call.1} parent=95 // pred_region
          %s1543 = sand.u32 %s265, 1
          %s1544 = scalar_lea.sflag [#allocation7], %s1543
          %s1545 = sand.u32 %s265, 1
          %s1546 = smul.addr %s1545, 8
          %s1547 = scalar_lea.vmem [#allocation16], %s1546
          %1548 = dma.done %s1544, 128
        $region100: #{tpu_custom_call.1} parent=95 // pred_fallthru
          _
        // Predicated region
        $region101: #{tpu_custom_call.1} parent=95 // pred_check
          %p1549 = pneg %p308
        $region102: #{tpu_custom_call.1} parent=95 // pred_check_branch
          %1551 = sbr.rel (%p1549) target = $region104
        $region103: #{tpu_custom_call.1} parent=95 // pred_region
          %s1552 = sand.u32 %s293, 1
          %s1553 = scalar_lea.sflag [#allocation18], %s1552
          %s1554 = sand.u32 %s293, 1
          %s1555 = smul.addr %s1554, 32
          %s1556 = scalar_lea.vmem [#allocation17], %s1555
          %1557 = dma.done %s1553, 512
        $region104: #{tpu_custom_call.1} parent=95 // pred_fallthru
          _
      $region96: #{tpu_custom_call.1} parent=5 // pred_fallthru
        _
    $region6: #{tpu_custom_call.1} parent=1 // loop_footer
      %s35 = sadd.s32 1, %s31
    $region7: #{tpu_custom_call.1} parent=1 // loop_footer_branch
      %30 = sbr.rel target = $region3
    $region8: #{tpu_custom_call.1} parent=1 // loop_exit
      _
    %1558 = vsyncpa [#allocation6], 1
    %s1559 = scalar_lea.sflag [#allocation6], 1
    %1560 = vsyncpa %s1559, 1
    %1561 = vsyncpa [#allocation9], 1
    %s1562 = scalar_lea.sflag [#allocation9], 1
    %1563 = vsyncpa %s1562, 1
    %1564 = vsyncpa [#allocation12], 1
    %1565 = vsyncpa [#allocation15], 1
    %1566 = vsyncpa [#allocation7], 1
    %s1567 = scalar_lea.sflag [#allocation7], 1
    %1568 = vsyncpa %s1567, 1
    %1569 = vsyncpa [#allocation18], 1
    %s1570 = scalar_lea.sflag [#allocation18], 1
    %1571 = vsyncpa %s1570, 1

</llo_original>
